<compile_context>
chip_gen: v7x
topology: tpu7x:2x2x1
jax: 0.10.0
libtpu: 0.0.40
codegen_flags: <defaults>
</compile_context>

<pallas_src>
import jax
import jax.numpy as jnp
from jax.experimental import pallas as pl
from jax.experimental.pallas import tpu as pltpu

# ------------------------- configuration (small shapes) -------------------------
B, S, WC = 2, 8, 8                 # batch, sequence length, max chars per word
WORD_VOCAB, CHAR_VOCAB = 50, 30
WORD_DIM, CHAR_DIM = 32, 16        # hyper_param.word_embed_dim / char_embed_dim
K_CNN = 8                          # hyper_param.char_cnn_kernels (filters per size)
KERNEL_SIZES = (2, 3, 4)           # char feature dim = 3 * K_CNN
NUM_BRANCH = len(KERNEL_SIZES)
WIN_SLOTS = 8                      # window positions padded to 8 (power of two)
FILT_SLOTS = 16                    # filters padded 8 -> 16 (window-group width)
BRANCH_COLS = WIN_SLOTS * FILT_SLOTS   # 128 = one vreg per branch
CNN_COLS = NUM_BRANCH * BRANCH_COLS    # 384
H = 32                             # hyper_param.lstm_hidden
LSTM_IN = WORD_DIM + NUM_BRANCH * K_CNN   # 56
NUM_TAGS = 9                       # len(vocabs[('ner',)])
FC_PAD = 128                       # lane-dense FC head width
TASK_VOCAB, DOMAIN_VOCAB, TD_DIM = 3, 3, 8
N_TOK = B * S                      # 16, token-major (s-major) rows in kernel

# packed small-operand buffer layout (rows)
SM_BCNN, SM_BBD, SM_BFC, SM_BINIT, SM_TD, SM_WINIT = 0, 1, 2, 3, 4, 4 + B
SM_ROWS, SM_COLS = 24, CNN_COLS


def _full_spec(shape):
    nd = len(shape)
    return pl.BlockSpec(shape, lambda *_, nd=nd: (0,) * nd)


# --------------------------- fused forward kernel --------------------------------
def _cross_ner_kernel(word_ref, charf_ref, wcnn_ref, wxw_ref, wxc_ref,
                      whh_ref, wfc_ref, sm_ref, score_ref, label_ref):
    f32 = jnp.float32
    bf16 = jnp.bfloat16
    h = H
    hh8 = 8 * h                                     # 256 gate columns

    # ---- unpack small operands (one packed DMA) ----
    sm = sm_ref[...]
    b_cnn = sm[SM_BCNN:SM_BCNN + 1, :]                              # (1, 384)
    b_bd = sm[SM_BBD:SM_BBD + 1, 0:hh8]                             # (1, 256)
    b_fc = sm[SM_BFC:SM_BFC + 1, 0:FC_PAD]                          # (1, 128)
    b_init = sm[SM_BINIT:SM_BINIT + 1, 0:h]                         # (1, 32)
    td = sm[SM_TD:SM_TD + B, 0:2 * TD_DIM]                          # (B, 16)
    w_init = sm[SM_WINIT:SM_WINIT + 2 * TD_DIM, 0:h]                # (16, 32)

    # ---- char CNN: one lane-dense Toeplitz matmul + hoisted bias/ReLU,
    #      then an XLU roll-max tree over the 8 window groups per branch.
    conv = jnp.dot(charf_ref[...], wcnn_ref[...], preferred_element_type=f32)
    conv = jnp.maximum(conv + b_cnn, 0.0)                           # (16, 384), >= 0
    feats = []
    for br in range(NUM_BRANCH):
        blk = conv[:, br * BRANCH_COLS:(br + 1) * BRANCH_COLS]      # (16, 128)
        for sft in (FILT_SLOTS, 2 * FILT_SLOTS, 4 * FILT_SLOTS):    # 16, 32, 64
            blk = jnp.maximum(blk, pltpu.roll(blk, sft, 1))
        feats.append(blk[:, 0:K_CNN])                               # per-filter max
    char_feat = jnp.concatenate(feats, axis=-1)                     # (16, 24) f32

    # ---- hoisted input projection: one pass covers all 8 steps, both directions.
    #      W_xw / W_xc columns: [forward 256 | backward 256]; gate bias folded in.
    x_all = (jnp.dot(word_ref[...], wxw_ref[...], preferred_element_type=f32)
             + jnp.dot(char_feat.astype(bf16), wxc_ref[...],
                       preferred_element_type=f32))                 # (16, 512)
    x_f = x_all[:, 0:hh8] + b_bd
    x_b = x_all[:, hh8:2 * hh8]
    # per-step x contribution (token t forward + token S-1-t backward); disjoint
    # column blocks, so a single add — all off the recurrent dependency chain.
    gx = [x_f[t * B:(t + 1) * B, :] + x_b[(S - 1 - t) * B:(S - t) * B, :]
          for t in range(S)]

    # ---- task/domain conditioned initial hidden state (NoParamLSTM stand-in) ----
    h0 = jnp.tanh(jnp.dot(td, w_init, preferred_element_type=f32) + b_init)   # (B, H)
    h_cat = jnp.concatenate([h0, h0], axis=-1)                      # [h_f | h_b]
    c_cat = jnp.zeros((B, 2 * h), f32)

    # ---- BiLSTM: fully unrolled; gate columns [i_f i_b | f_f f_b | o_f o_b | g_f g_b]
    whh = whh_ref[...]                                              # (2H, 8H) f32
    hs = []
    for t in range(S):
        gates = jnp.dot(h_cat, whh, preferred_element_type=f32) + gx[t]   # (B, 256)
        sg = jax.nn.sigmoid(gates[:, 0:6 * h])                      # i, f, o (both dirs)
        gg = jnp.tanh(gates[:, 6 * h:8 * h])                        # g (both dirs)
        c_cat = sg[:, 2 * h:4 * h] * c_cat + sg[:, 0:2 * h] * gg
        h_cat = sg[:, 4 * h:6 * h] * jnp.tanh(c_cat)
        hs.append(h_cat)

    # ---- re-assemble token-major hidden states (post-loop, vreg-resident) ----
    rnn_f = jnp.concatenate([hs[t][:, 0:h] for t in range(S)], axis=0)            # (16, 32)
    rnn_b = jnp.concatenate([hs[S - 1 - t][:, h:2 * h] for t in range(S)], axis=0)

    # ---- NER head: lane-dense padded FC, argmax (pad bias is -1e30) ----
    wfc = wfc_ref[...]                                              # (64, 128) bf16
    scores = (jnp.dot(rnn_f.astype(bf16), wfc[0:h, :], preferred_element_type=f32)
              + jnp.dot(rnn_b.astype(bf16), wfc[h:2 * h, :], preferred_element_type=f32)
              + b_fc)                                               # (16, 128)
    score_ref[...] = scores[:, 0:NUM_TAGS]
    mx = jnp.max(scores, axis=-1, keepdims=True)
    idx = jax.lax.broadcasted_iota(jnp.int32, scores.shape, 1)
    label_ref[...] = jnp.min(jnp.where(scores == mx, idx, jnp.int32(FC_PAD)),
                             axis=-1, keepdims=True)


def cross_ner_fused(word_x, char_flat, w_cnn, w_xw, w_xc, w_hh, w_fc, smalls):
    args = (word_x, char_flat, w_cnn, w_xw, w_xc, w_hh, w_fc, smalls)
    return pl.pallas_call(
        _cross_ner_kernel,
        out_shape=(jax.ShapeDtypeStruct((N_TOK, NUM_TAGS), jnp.float32),
                   jax.ShapeDtypeStruct((N_TOK, 1), jnp.int32)),
        in_specs=[_full_spec(a.shape) for a in args],
        out_specs=(_full_spec((N_TOK, NUM_TAGS)), _full_spec((N_TOK, 1))),
    )(*args)


# ------------------------- wrapper-side weight preparation -----------------------
def _build_cnn_weights(params):
    """Toeplitz weight (WC*CHAR_DIM, 384): per branch 8 window slots x 16 filter
    slots (zero padded) so pooling is a lane-dense roll-max tree.  Zero-weight /
    zero-bias pad columns stay 0 post-ReLU and never win the max."""
    w_blocks, b_blocks = [], []
    for ks in KERNEL_SIZES:
        w = params["w_conv%d" % ks]                  # (ks, CHAR_DIM, K_CNN)
        b = params["b_conv%d" % ks]                  # (1, K_CNN)
        span = WC - ks + 1
        for t in range(WIN_SLOTS):
            if t < span:
                col = jnp.pad(w, ((t, WC - ks - t), (0, 0), (0, 0)))
                col = col.reshape(WC * CHAR_DIM, K_CNN)
                col = jnp.pad(col, ((0, 0), (0, FILT_SLOTS - K_CNN)))
                bias = jnp.pad(b, ((0, 0), (0, FILT_SLOTS - K_CNN)))
            else:
                col = jnp.zeros((WC * CHAR_DIM, FILT_SLOTS), jnp.float32)
                bias = jnp.zeros((1, FILT_SLOTS), jnp.float32)
            w_blocks.append(col)
            b_blocks.append(bias)
    w_cnn = jnp.concatenate(w_blocks, axis=1)        # (128, 384)
    b_cnn = jnp.concatenate(b_blocks, axis=1)        # (1, 384)
    return w_cnn.astype(jnp.bfloat16), b_cnn


def _split_gates(w):
    return w[..., 0:H], w[..., H:2 * H], w[..., 2 * H:3 * H], w[..., 3 * H:4 * H]


def _dir_cols(i, f, g, o, rows, fwd):
    """Place one direction's gate blocks into the interleaved 8H column layout
    [i_f i_b f_f f_b o_f o_b g_f g_b]; the other direction's slots stay zero."""
    z = jnp.zeros((rows, H), jnp.float32)
    if fwd:
        blocks = [i, z, f, z, o, z, g, z]
    else:
        blocks = [z, i, z, f, z, o, z, g]
    return jnp.concatenate(blocks, axis=-1)


def _build_lstm_weights(params):
    # recurrent weight (2H, 8H): rows [h_f | h_b]
    i_f, f_f, g_f, o_f = _split_gates(params["whh_f"])
    i_b, f_b, g_b, o_b = _split_gates(params["whh_b"])
    w_hh = jnp.concatenate([_dir_cols(i_f, f_f, g_f, o_f, H, True),
                            _dir_cols(i_b, f_b, g_b, o_b, H, False)], axis=0)

    # input weights split by input block (word / char rows) and stacked by
    # direction along columns: (rows, 16H) = [forward 8H | backward 8H].
    def build_wx(row_lo, row_hi):
        nrows = row_hi - row_lo
        fi, ff, fg, fo = _split_gates(params["wih_f"][row_lo:row_hi])
        bi, bf, bg, bo = _split_gates(params["wih_b"][row_lo:row_hi])
        return jnp.concatenate([_dir_cols(fi, ff, fg, fo, nrows, True),
                                _dir_cols(bi, bf, bg, bo, nrows, False)], axis=1)

    w_xw = build_wx(0, WORD_DIM)                     # (32, 512)
    w_xc = build_wx(WORD_DIM, LSTM_IN)               # (24, 512)

    bi_f, bf_f, bg_f, bo_f = _split_gates(params["b_f"])
    bi_b, bf_b, bg_b, bo_b = _split_gates(params["b_b"])
    b_bd = jnp.concatenate([bi_f, bi_b, bf_f, bf_b, bo_f, bo_b, bg_f, bg_b], axis=-1)
    return (w_hh.astype(jnp.float32), w_xw.astype(jnp.bfloat16),
            w_xc.astype(jnp.bfloat16), b_bd)


def _build_fc_weights(params):
    w_fc = jnp.pad(params["w_fc"], ((0, 0), (0, FC_PAD - NUM_TAGS)))       # (64, 128)
    b_fc = jnp.concatenate(
        [params["b_fc"], jnp.full((1, FC_PAD - NUM_TAGS), -1e30, jnp.float32)], axis=1)
    return w_fc.astype(jnp.bfloat16), b_fc


def _pack_smalls(b_cnn, b_bd, b_fc, td, params):
    sm = jnp.zeros((SM_ROWS, SM_COLS), jnp.float32)
    sm = sm.at[SM_BCNN, :].set(b_cnn[0])
    sm = sm.at[SM_BBD, 0:8 * H].set(b_bd[0])
    sm = sm.at[SM_BFC, 0:FC_PAD].set(b_fc[0])
    sm = sm.at[SM_BINIT, 0:H].set(params["b_init"][0])
    sm = sm.at[SM_TD:SM_TD + B, 0:2 * TD_DIM].set(td)
    sm = sm.at[SM_WINIT:SM_WINIT + 2 * TD_DIM, 0:H].set(params["w_init"])
    return sm


# --------------------------------- parameters ------------------------------------
def init_params(key):
    ks = jax.random.split(key, 16)
    u = lambda k, shape, s=0.1: jax.random.uniform(
        k, shape, jnp.float32, minval=-s, maxval=s)
    p = {
        "word_table": u(ks[0], (WORD_VOCAB, WORD_DIM)),
        "char_table": u(ks[1], (CHAR_VOCAB, CHAR_DIM)),
        "task_table": u(ks[2], (TASK_VOCAB, TD_DIM), (3.0 / TD_DIM) ** 0.5),
        "domain_table": u(ks[3], (DOMAIN_VOCAB, TD_DIM), (3.0 / TD_DIM) ** 0.5),
        # char CNN: kernel sizes 2/3/4, K_CNN filters each
        "w_conv2": u(ks[4], (2, CHAR_DIM, K_CNN)),
        "b_conv2": u(ks[5], (1, K_CNN)),
        "w_conv3": u(ks[6], (3, CHAR_DIM, K_CNN)),
        "b_conv3": u(ks[7], (1, K_CNN)),
        "w_conv4": u(ks[8], (4, CHAR_DIM, K_CNN)),
        "b_conv4": u(ks[9], (1, K_CNN)),
        # BiLSTM (gate order i,f,g,o)
        "wih_f": u(ks[10], (LSTM_IN, 4 * H)),
        "whh_f": u(ks[11], (H, 4 * H)),
        "b_f": jnp.zeros((1, 4 * H), jnp.float32),
        "wih_b": u(ks[12], (LSTM_IN, 4 * H)),
        "whh_b": u(ks[13], (H, 4 * H)),
        "b_b": jnp.zeros((1, 4 * H), jnp.float32),
        # task/domain -> initial hidden state projection
        "w_init": u(ks[14], (2 * TD_DIM, H)),
        "b_init": jnp.zeros((1, H), jnp.float32),
        # final FC head (NER)
        "w_fc": u(ks[15], (2 * H, NUM_TAGS)),
        "b_fc": jnp.zeros((1, NUM_TAGS), jnp.float32),
    }
    return p


# --------------------------------- forward pass -----------------------------------
def cross_ner_forward(params, word_idx, char_idx, word_lens, tags_idx,
                      tokens_mask, task_idx, domain_idx):
    # embedding lookups (glue), laid out token-major (s-major) for the kernel
    word_emb = jnp.take(params["word_table"], word_idx, axis=0)         # (B,S,WORD_DIM)
    char_emb = jnp.take(params["char_table"], char_idx, axis=0)         # (B,S,WC,CHAR_DIM)
    word_x = jnp.transpose(word_emb, (1, 0, 2)).reshape(
        N_TOK, WORD_DIM).astype(jnp.bfloat16)
    char_flat = jnp.transpose(char_emb, (1, 0, 2, 3)).reshape(
        N_TOK, WC * CHAR_DIM).astype(jnp.bfloat16)
    task_emb = jnp.take(params["task_table"], task_idx, axis=0)         # (B,TD_DIM)
    domain_emb = jnp.take(params["domain_table"], domain_idx, axis=0)   # (B,TD_DIM)
    td = jnp.concatenate([task_emb, domain_emb], axis=-1)               # (B, 16)

    # one-time weight re-layout (Toeplitz char-CNN, direction-split gate weights)
    w_cnn, b_cnn = _build_cnn_weights(params)
    w_hh, w_xw, w_xc, b_bd = _build_lstm_weights(params)
    w_fc, b_fc = _build_fc_weights(params)
    smalls = _pack_smalls(b_cnn, b_bd, b_fc, td, params)

    # single fused Pallas kernel: char CNN + BiLSTM + FC + argmax
    scores_sb, labels_sb = cross_ner_fused(
        word_x, char_flat, w_cnn, w_xw, w_xc, w_hh, w_fc, smalls)

    word_score = jnp.transpose(scores_sb.reshape(S, B, NUM_TAGS), (1, 0, 2))
    label_hat = labels_sb.reshape(S, B).T
    return word_score, tags_idx, label_hat, tokens_mask


# ------------------------------------- main ----------------------------------------
if __name__ == "__main__":
    key = jax.random.PRNGKey(0)
    pkey, k1, k2, k3, k4, k5 = jax.random.split(key, 6)
    params = init_params(pkey)

    word_idx = jax.random.randint(k1, (B, S), 0, WORD_VOCAB, dtype=jnp.int32)
    char_idx = jax.random.randint(k2, (B, S, WC), 0, CHAR_VOCAB, dtype=jnp.int32)
    tags_idx = jax.random.randint(k3, (B, S), 0, NUM_TAGS, dtype=jnp.int32)
    task_idx = jax.random.randint(k4, (B,), 0, TASK_VOCAB, dtype=jnp.int32)
    domain_idx = jax.random.randint(k5, (B,), 0, DOMAIN_VOCAB, dtype=jnp.int32)
    word_lens = jnp.full((B,), S, dtype=jnp.int32)
    tokens_mask = jnp.ones((B, S), dtype=jnp.int32)

    forward = jax.jit(cross_ner_forward)
    word_score, tags_out, label_hat, mask_out = forward(
        params, word_idx, char_idx, word_lens, tags_idx,
        tokens_mask, task_idx, domain_idx)

    jax.block_until_ready((word_score, tags_out, label_hat, mask_out))
    assert word_score.shape == (B, S, NUM_TAGS)
    assert label_hat.shape == (B, S)
    assert label_hat.dtype == jnp.int32
    print("KERNEL_OK")
</pallas_src>

<mosaic_0001>
module attributes {stable_mosaic.version = 11 : i64} {
  func.func @_cross_ner_kernel(%arg0: memref<16x32xbf16, #tpu.memory_space<vmem>>, %arg1: memref<16x128xbf16, #tpu.memory_space<vmem>>, %arg2: memref<128x384xbf16, #tpu.memory_space<vmem>>, %arg3: memref<32x512xbf16, #tpu.memory_space<vmem>>, %arg4: memref<24x512xbf16, #tpu.memory_space<vmem>>, %arg5: memref<64x256xf32, #tpu.memory_space<vmem>>, %arg6: memref<64x128xbf16, #tpu.memory_space<vmem>>, %arg7: memref<24x384xf32, #tpu.memory_space<vmem>>, %arg8: memref<16x9xf32, #tpu.memory_space<vmem>>, %arg9: memref<16x1xi32, #tpu.memory_space<vmem>>) attributes {dimension_semantics = [], scalar_prefetch = 0 : i64, scratch_operands = 0 : i64, tpu.core_type = #tpu.core_type<tc>} {
    %c0 = arith.constant 0 : index
    %c0_0 = arith.constant 0 : index
    %0 = vector.load %arg7[%c0, %c0_0] : memref<24x384xf32, #tpu.memory_space<vmem>>, vector<24x384xf32>
    %1 = vector.extract_strided_slice %0 {offsets = [0, 0], sizes = [1, 384], strides = [1, 1]} : vector<24x384xf32> to vector<1x384xf32>
    %2 = vector.extract_strided_slice %0 {offsets = [1, 0], sizes = [1, 256], strides = [1, 1]} : vector<24x384xf32> to vector<1x256xf32>
    %3 = vector.extract_strided_slice %0 {offsets = [2, 0], sizes = [1, 128], strides = [1, 1]} : vector<24x384xf32> to vector<1x128xf32>
    %4 = vector.extract_strided_slice %0 {offsets = [3, 0], sizes = [1, 32], strides = [1, 1]} : vector<24x384xf32> to vector<1x32xf32>
    %5 = vector.extract_strided_slice %0 {offsets = [4, 0], sizes = [2, 16], strides = [1, 1]} : vector<24x384xf32> to vector<2x16xf32>
    %6 = vector.extract_strided_slice %0 {offsets = [6, 0], sizes = [16, 32], strides = [1, 1]} : vector<24x384xf32> to vector<16x32xf32>
    %c0_1 = arith.constant 0 : index
    %c0_2 = arith.constant 0 : index
    %7 = vector.load %arg1[%c0_1, %c0_2] : memref<16x128xbf16, #tpu.memory_space<vmem>>, vector<16x128xbf16>
    %c0_3 = arith.constant 0 : index
    %c0_4 = arith.constant 0 : index
    %8 = vector.load %arg2[%c0_3, %c0_4] : memref<128x384xbf16, #tpu.memory_space<vmem>>, vector<128x384xbf16>
    %cst = arith.constant dense<0.000000e+00> : vector<16x384xf32>
    %9 = tpu.matmul %7, %8, %cst {dimension_numbers = #tpu.dot_dimension_numbers<[1], [0], [0], [1], [0, 0, 1, 1], [], []>} : vector<16x128xbf16>, vector<128x384xbf16>, vector<16x384xf32> -> vector<16x384xf32>
    %10 = vector.broadcast %1 : vector<1x384xf32> to vector<16x384xf32>
    %11 = arith.addf %9, %10 : vector<16x384xf32>
    %cst_5 = arith.constant 0.000000e+00 : f32
    %12 = vector.broadcast %cst_5 : f32 to vector<16x384xf32>
    %13 = arith.maximumf %11, %12 : vector<16x384xf32>
    %14 = vector.extract_strided_slice %13 {offsets = [0, 0], sizes = [16, 128], strides = [1, 1]} : vector<16x384xf32> to vector<16x128xf32>
    %c16_i32 = arith.constant 16 : i32
    %15 = tpu.dynamic_rotate %14 by %c16_i32 dim 1 : vector<16x128xf32>, i32 -> vector<16x128xf32>
    %16 = arith.maximumf %14, %15 : vector<16x128xf32>
    %c32_i32 = arith.constant 32 : i32
    %17 = tpu.dynamic_rotate %16 by %c32_i32 dim 1 : vector<16x128xf32>, i32 -> vector<16x128xf32>
    %18 = arith.maximumf %16, %17 : vector<16x128xf32>
    %c64_i32 = arith.constant 64 : i32
    %19 = tpu.dynamic_rotate %18 by %c64_i32 dim 1 : vector<16x128xf32>, i32 -> vector<16x128xf32>
    %20 = arith.maximumf %18, %19 : vector<16x128xf32>
    %21 = vector.extract_strided_slice %20 {offsets = [0, 0], sizes = [16, 8], strides = [1, 1]} : vector<16x128xf32> to vector<16x8xf32>
    %22 = vector.extract_strided_slice %13 {offsets = [0, 128], sizes = [16, 128], strides = [1, 1]} : vector<16x384xf32> to vector<16x128xf32>
    %c16_i32_6 = arith.constant 16 : i32
    %23 = tpu.dynamic_rotate %22 by %c16_i32_6 dim 1 : vector<16x128xf32>, i32 -> vector<16x128xf32>
    %24 = arith.maximumf %22, %23 : vector<16x128xf32>
    %c32_i32_7 = arith.constant 32 : i32
    %25 = tpu.dynamic_rotate %24 by %c32_i32_7 dim 1 : vector<16x128xf32>, i32 -> vector<16x128xf32>
    %26 = arith.maximumf %24, %25 : vector<16x128xf32>
    %c64_i32_8 = arith.constant 64 : i32
    %27 = tpu.dynamic_rotate %26 by %c64_i32_8 dim 1 : vector<16x128xf32>, i32 -> vector<16x128xf32>
    %28 = arith.maximumf %26, %27 : vector<16x128xf32>
    %29 = vector.extract_strided_slice %28 {offsets = [0, 0], sizes = [16, 8], strides = [1, 1]} : vector<16x128xf32> to vector<16x8xf32>
    %30 = vector.extract_strided_slice %13 {offsets = [0, 256], sizes = [16, 128], strides = [1, 1]} : vector<16x384xf32> to vector<16x128xf32>
    %c16_i32_9 = arith.constant 16 : i32
    %31 = tpu.dynamic_rotate %30 by %c16_i32_9 dim 1 : vector<16x128xf32>, i32 -> vector<16x128xf32>
    %32 = arith.maximumf %30, %31 : vector<16x128xf32>
    %c32_i32_10 = arith.constant 32 : i32
    %33 = tpu.dynamic_rotate %32 by %c32_i32_10 dim 1 : vector<16x128xf32>, i32 -> vector<16x128xf32>
    %34 = arith.maximumf %32, %33 : vector<16x128xf32>
    %c64_i32_11 = arith.constant 64 : i32
    %35 = tpu.dynamic_rotate %34 by %c64_i32_11 dim 1 : vector<16x128xf32>, i32 -> vector<16x128xf32>
    %36 = arith.maximumf %34, %35 : vector<16x128xf32>
    %37 = vector.extract_strided_slice %36 {offsets = [0, 0], sizes = [16, 8], strides = [1, 1]} : vector<16x128xf32> to vector<16x8xf32>
    %38 = tpu.concatenate %21, %29, %37 in 1 : vector<16x8xf32>, vector<16x8xf32>, vector<16x8xf32> -> vector<16x24xf32>
    %c0_12 = arith.constant 0 : index
    %c0_13 = arith.constant 0 : index
    %39 = vector.load %arg0[%c0_12, %c0_13] : memref<16x32xbf16, #tpu.memory_space<vmem>>, vector<16x32xbf16>
    %c0_14 = arith.constant 0 : index
    %c0_15 = arith.constant 0 : index
    %40 = vector.load %arg3[%c0_14, %c0_15] : memref<32x512xbf16, #tpu.memory_space<vmem>>, vector<32x512xbf16>
    %cst_16 = arith.constant dense<0.000000e+00> : vector<16x512xf32>
    %41 = tpu.matmul %39, %40, %cst_16 {dimension_numbers = #tpu.dot_dimension_numbers<[1], [0], [0], [1], [0, 0, 1, 1], [], []>} : vector<16x32xbf16>, vector<32x512xbf16>, vector<16x512xf32> -> vector<16x512xf32>
    %42 = arith.truncf %38 : vector<16x24xf32> to vector<16x24xbf16>
    %c0_17 = arith.constant 0 : index
    %c0_18 = arith.constant 0 : index
    %43 = vector.load %arg4[%c0_17, %c0_18] : memref<24x512xbf16, #tpu.memory_space<vmem>>, vector<24x512xbf16>
    %cst_19 = arith.constant dense<0.000000e+00> : vector<16x512xf32>
    %44 = tpu.matmul %42, %43, %cst_19 {dimension_numbers = #tpu.dot_dimension_numbers<[1], [0], [0], [1], [0, 0, 1, 1], [], []>} : vector<16x24xbf16>, vector<24x512xbf16>, vector<16x512xf32> -> vector<16x512xf32>
    %45 = arith.addf %41, %44 : vector<16x512xf32>
    %46 = vector.extract_strided_slice %45 {offsets = [0, 0], sizes = [16, 256], strides = [1, 1]} : vector<16x512xf32> to vector<16x256xf32>
    %47 = vector.broadcast %2 : vector<1x256xf32> to vector<16x256xf32>
    %48 = arith.addf %46, %47 : vector<16x256xf32>
    %49 = vector.extract_strided_slice %45 {offsets = [0, 256], sizes = [16, 256], strides = [1, 1]} : vector<16x512xf32> to vector<16x256xf32>
    %50 = vector.extract_strided_slice %48 {offsets = [0, 0], sizes = [2, 256], strides = [1, 1]} : vector<16x256xf32> to vector<2x256xf32>
    %51 = vector.extract_strided_slice %49 {offsets = [14, 0], sizes = [2, 256], strides = [1, 1]} : vector<16x256xf32> to vector<2x256xf32>
    %52 = arith.addf %50, %51 : vector<2x256xf32>
    %53 = vector.extract_strided_slice %48 {offsets = [2, 0], sizes = [2, 256], strides = [1, 1]} : vector<16x256xf32> to vector<2x256xf32>
    %54 = vector.extract_strided_slice %49 {offsets = [12, 0], sizes = [2, 256], strides = [1, 1]} : vector<16x256xf32> to vector<2x256xf32>
    %55 = arith.addf %53, %54 : vector<2x256xf32>
    %56 = vector.extract_strided_slice %48 {offsets = [4, 0], sizes = [2, 256], strides = [1, 1]} : vector<16x256xf32> to vector<2x256xf32>
    %57 = vector.extract_strided_slice %49 {offsets = [10, 0], sizes = [2, 256], strides = [1, 1]} : vector<16x256xf32> to vector<2x256xf32>
    %58 = arith.addf %56, %57 : vector<2x256xf32>
    %59 = vector.extract_strided_slice %48 {offsets = [6, 0], sizes = [2, 256], strides = [1, 1]} : vector<16x256xf32> to vector<2x256xf32>
    %60 = vector.extract_strided_slice %49 {offsets = [8, 0], sizes = [2, 256], strides = [1, 1]} : vector<16x256xf32> to vector<2x256xf32>
    %61 = arith.addf %59, %60 : vector<2x256xf32>
    %62 = vector.extract_strided_slice %48 {offsets = [8, 0], sizes = [2, 256], strides = [1, 1]} : vector<16x256xf32> to vector<2x256xf32>
    %63 = vector.extract_strided_slice %49 {offsets = [6, 0], sizes = [2, 256], strides = [1, 1]} : vector<16x256xf32> to vector<2x256xf32>
    %64 = arith.addf %62, %63 : vector<2x256xf32>
    %65 = vector.extract_strided_slice %48 {offsets = [10, 0], sizes = [2, 256], strides = [1, 1]} : vector<16x256xf32> to vector<2x256xf32>
    %66 = vector.extract_strided_slice %49 {offsets = [4, 0], sizes = [2, 256], strides = [1, 1]} : vector<16x256xf32> to vector<2x256xf32>
    %67 = arith.addf %65, %66 : vector<2x256xf32>
    %68 = vector.extract_strided_slice %48 {offsets = [12, 0], sizes = [2, 256], strides = [1, 1]} : vector<16x256xf32> to vector<2x256xf32>
    %69 = vector.extract_strided_slice %49 {offsets = [2, 0], sizes = [2, 256], strides = [1, 1]} : vector<16x256xf32> to vector<2x256xf32>
    %70 = arith.addf %68, %69 : vector<2x256xf32>
    %71 = vector.extract_strided_slice %48 {offsets = [14, 0], sizes = [2, 256], strides = [1, 1]} : vector<16x256xf32> to vector<2x256xf32>
    %72 = vector.extract_strided_slice %49 {offsets = [0, 0], sizes = [2, 256], strides = [1, 1]} : vector<16x256xf32> to vector<2x256xf32>
    %73 = arith.addf %71, %72 : vector<2x256xf32>
    %cst_20 = arith.constant dense<0.000000e+00> : vector<2x32xf32>
    %74 = tpu.matmul %5, %6, %cst_20 {dimension_numbers = #tpu.dot_dimension_numbers<[1], [0], [0], [1], [0, 0, 1, 1], [], []>} : vector<2x16xf32>, vector<16x32xf32>, vector<2x32xf32> -> vector<2x32xf32>
    %75 = vector.broadcast %4 : vector<1x32xf32> to vector<2x32xf32>
    %76 = arith.addf %74, %75 : vector<2x32xf32>
    %77 = math.tanh %76 : vector<2x32xf32>
    %78 = tpu.concatenate %77, %77 in 1 : vector<2x32xf32>, vector<2x32xf32> -> vector<2x64xf32>
    %cst_21 = arith.constant 0.000000e+00 : f32
    %79 = vector.broadcast %cst_21 : f32 to vector<2x64xf32>
    %c0_22 = arith.constant 0 : index
    %c0_23 = arith.constant 0 : index
    %80 = vector.load %arg5[%c0_22, %c0_23] : memref<64x256xf32, #tpu.memory_space<vmem>>, vector<64x256xf32>
    %cst_24 = arith.constant dense<0.000000e+00> : vector<2x256xf32>
    %81 = tpu.matmul %78, %80, %cst_24 {dimension_numbers = #tpu.dot_dimension_numbers<[1], [0], [0], [1], [0, 0, 1, 1], [], []>} : vector<2x64xf32>, vector<64x256xf32>, vector<2x256xf32> -> vector<2x256xf32>
    %82 = arith.addf %81, %52 : vector<2x256xf32>
    %83 = vector.extract_strided_slice %82 {offsets = [0, 0], sizes = [2, 192], strides = [1, 1]} : vector<2x256xf32> to vector<2x192xf32>
    %84 = arith.negf %83 : vector<2x192xf32>
    %85 = math.exp %84 : vector<2x192xf32>
    %cst_25 = arith.constant 1.000000e+00 : f32
    %86 = vector.broadcast %cst_25 : f32 to vector<2x192xf32>
    %87 = arith.addf %86, %85 : vector<2x192xf32>
    %88 = arith.divf %86, %87 : vector<2x192xf32>
    %89 = vector.extract_strided_slice %82 {offsets = [0, 192], sizes = [2, 64], strides = [1, 1]} : vector<2x256xf32> to vector<2x64xf32>
    %90 = math.tanh %89 : vector<2x64xf32>
    %91 = vector.extract_strided_slice %88 {offsets = [0, 64], sizes = [2, 64], strides = [1, 1]} : vector<2x192xf32> to vector<2x64xf32>
    %92 = arith.mulf %91, %79 : vector<2x64xf32>
    %93 = vector.extract_strided_slice %88 {offsets = [0, 0], sizes = [2, 64], strides = [1, 1]} : vector<2x192xf32> to vector<2x64xf32>
    %94 = arith.mulf %93, %90 : vector<2x64xf32>
    %95 = arith.addf %92, %94 : vector<2x64xf32>
    %96 = vector.extract_strided_slice %88 {offsets = [0, 128], sizes = [2, 64], strides = [1, 1]} : vector<2x192xf32> to vector<2x64xf32>
    %97 = math.tanh %95 : vector<2x64xf32>
    %98 = arith.mulf %96, %97 : vector<2x64xf32>
    %cst_26 = arith.constant dense<0.000000e+00> : vector<2x256xf32>
    %99 = tpu.matmul %98, %80, %cst_26 {dimension_numbers = #tpu.dot_dimension_numbers<[1], [0], [0], [1], [0, 0, 1, 1], [], []>} : vector<2x64xf32>, vector<64x256xf32>, vector<2x256xf32> -> vector<2x256xf32>
    %100 = arith.addf %99, %55 : vector<2x256xf32>
    %101 = vector.extract_strided_slice %100 {offsets = [0, 0], sizes = [2, 192], strides = [1, 1]} : vector<2x256xf32> to vector<2x192xf32>
    %102 = arith.negf %101 : vector<2x192xf32>
    %103 = math.exp %102 : vector<2x192xf32>
    %cst_27 = arith.constant 1.000000e+00 : f32
    %104 = vector.broadcast %cst_27 : f32 to vector<2x192xf32>
    %105 = arith.addf %104, %103 : vector<2x192xf32>
    %106 = arith.divf %104, %105 : vector<2x192xf32>
    %107 = vector.extract_strided_slice %100 {offsets = [0, 192], sizes = [2, 64], strides = [1, 1]} : vector<2x256xf32> to vector<2x64xf32>
    %108 = math.tanh %107 : vector<2x64xf32>
    %109 = vector.extract_strided_slice %106 {offsets = [0, 64], sizes = [2, 64], strides = [1, 1]} : vector<2x192xf32> to vector<2x64xf32>
    %110 = arith.mulf %109, %95 : vector<2x64xf32>
    %111 = vector.extract_strided_slice %106 {offsets = [0, 0], sizes = [2, 64], strides = [1, 1]} : vector<2x192xf32> to vector<2x64xf32>
    %112 = arith.mulf %111, %108 : vector<2x64xf32>
    %113 = arith.addf %110, %112 : vector<2x64xf32>
    %114 = vector.extract_strided_slice %106 {offsets = [0, 128], sizes = [2, 64], strides = [1, 1]} : vector<2x192xf32> to vector<2x64xf32>
    %115 = math.tanh %113 : vector<2x64xf32>
    %116 = arith.mulf %114, %115 : vector<2x64xf32>
    %cst_28 = arith.constant dense<0.000000e+00> : vector<2x256xf32>
    %117 = tpu.matmul %116, %80, %cst_28 {dimension_numbers = #tpu.dot_dimension_numbers<[1], [0], [0], [1], [0, 0, 1, 1], [], []>} : vector<2x64xf32>, vector<64x256xf32>, vector<2x256xf32> -> vector<2x256xf32>
    %118 = arith.addf %117, %58 : vector<2x256xf32>
    %119 = vector.extract_strided_slice %118 {offsets = [0, 0], sizes = [2, 192], strides = [1, 1]} : vector<2x256xf32> to vector<2x192xf32>
    %120 = arith.negf %119 : vector<2x192xf32>
    %121 = math.exp %120 : vector<2x192xf32>
    %cst_29 = arith.constant 1.000000e+00 : f32
    %122 = vector.broadcast %cst_29 : f32 to vector<2x192xf32>
    %123 = arith.addf %122, %121 : vector<2x192xf32>
    %124 = arith.divf %122, %123 : vector<2x192xf32>
    %125 = vector.extract_strided_slice %118 {offsets = [0, 192], sizes = [2, 64], strides = [1, 1]} : vector<2x256xf32> to vector<2x64xf32>
    %126 = math.tanh %125 : vector<2x64xf32>
    %127 = vector.extract_strided_slice %124 {offsets = [0, 64], sizes = [2, 64], strides = [1, 1]} : vector<2x192xf32> to vector<2x64xf32>
    %128 = arith.mulf %127, %113 : vector<2x64xf32>
    %129 = vector.extract_strided_slice %124 {offsets = [0, 0], sizes = [2, 64], strides = [1, 1]} : vector<2x192xf32> to vector<2x64xf32>
    %130 = arith.mulf %129, %126 : vector<2x64xf32>
    %131 = arith.addf %128, %130 : vector<2x64xf32>
    %132 = vector.extract_strided_slice %124 {offsets = [0, 128], sizes = [2, 64], strides = [1, 1]} : vector<2x192xf32> to vector<2x64xf32>
    %133 = math.tanh %131 : vector<2x64xf32>
    %134 = arith.mulf %132, %133 : vector<2x64xf32>
    %cst_30 = arith.constant dense<0.000000e+00> : vector<2x256xf32>
    %135 = tpu.matmul %134, %80, %cst_30 {dimension_numbers = #tpu.dot_dimension_numbers<[1], [0], [0], [1], [0, 0, 1, 1], [], []>} : vector<2x64xf32>, vector<64x256xf32>, vector<2x256xf32> -> vector<2x256xf32>
    %136 = arith.addf %135, %61 : vector<2x256xf32>
    %137 = vector.extract_strided_slice %136 {offsets = [0, 0], sizes = [2, 192], strides = [1, 1]} : vector<2x256xf32> to vector<2x192xf32>
    %138 = arith.negf %137 : vector<2x192xf32>
    %139 = math.exp %138 : vector<2x192xf32>
    %cst_31 = arith.constant 1.000000e+00 : f32
    %140 = vector.broadcast %cst_31 : f32 to vector<2x192xf32>
    %141 = arith.addf %140, %139 : vector<2x192xf32>
    %142 = arith.divf %140, %141 : vector<2x192xf32>
    %143 = vector.extract_strided_slice %136 {offsets = [0, 192], sizes = [2, 64], strides = [1, 1]} : vector<2x256xf32> to vector<2x64xf32>
    %144 = math.tanh %143 : vector<2x64xf32>
    %145 = vector.extract_strided_slice %142 {offsets = [0, 64], sizes = [2, 64], strides = [1, 1]} : vector<2x192xf32> to vector<2x64xf32>
    %146 = arith.mulf %145, %131 : vector<2x64xf32>
    %147 = vector.extract_strided_slice %142 {offsets = [0, 0], sizes = [2, 64], strides = [1, 1]} : vector<2x192xf32> to vector<2x64xf32>
    %148 = arith.mulf %147, %144 : vector<2x64xf32>
    %149 = arith.addf %146, %148 : vector<2x64xf32>
    %150 = vector.extract_strided_slice %142 {offsets = [0, 128], sizes = [2, 64], strides = [1, 1]} : vector<2x192xf32> to vector<2x64xf32>
    %151 = math.tanh %149 : vector<2x64xf32>
    %152 = arith.mulf %150, %151 : vector<2x64xf32>
    %cst_32 = arith.constant dense<0.000000e+00> : vector<2x256xf32>
    %153 = tpu.matmul %152, %80, %cst_32 {dimension_numbers = #tpu.dot_dimension_numbers<[1], [0], [0], [1], [0, 0, 1, 1], [], []>} : vector<2x64xf32>, vector<64x256xf32>, vector<2x256xf32> -> vector<2x256xf32>
    %154 = arith.addf %153, %64 : vector<2x256xf32>
    %155 = vector.extract_strided_slice %154 {offsets = [0, 0], sizes = [2, 192], strides = [1, 1]} : vector<2x256xf32> to vector<2x192xf32>
    %156 = arith.negf %155 : vector<2x192xf32>
    %157 = math.exp %156 : vector<2x192xf32>
    %cst_33 = arith.constant 1.000000e+00 : f32
    %158 = vector.broadcast %cst_33 : f32 to vector<2x192xf32>
    %159 = arith.addf %158, %157 : vector<2x192xf32>
    %160 = arith.divf %158, %159 : vector<2x192xf32>
    %161 = vector.extract_strided_slice %154 {offsets = [0, 192], sizes = [2, 64], strides = [1, 1]} : vector<2x256xf32> to vector<2x64xf32>
    %162 = math.tanh %161 : vector<2x64xf32>
    %163 = vector.extract_strided_slice %160 {offsets = [0, 64], sizes = [2, 64], strides = [1, 1]} : vector<2x192xf32> to vector<2x64xf32>
    %164 = arith.mulf %163, %149 : vector<2x64xf32>
    %165 = vector.extract_strided_slice %160 {offsets = [0, 0], sizes = [2, 64], strides = [1, 1]} : vector<2x192xf32> to vector<2x64xf32>
    %166 = arith.mulf %165, %162 : vector<2x64xf32>
    %167 = arith.addf %164, %166 : vector<2x64xf32>
    %168 = vector.extract_strided_slice %160 {offsets = [0, 128], sizes = [2, 64], strides = [1, 1]} : vector<2x192xf32> to vector<2x64xf32>
    %169 = math.tanh %167 : vector<2x64xf32>
    %170 = arith.mulf %168, %169 : vector<2x64xf32>
    %cst_34 = arith.constant dense<0.000000e+00> : vector<2x256xf32>
    %171 = tpu.matmul %170, %80, %cst_34 {dimension_numbers = #tpu.dot_dimension_numbers<[1], [0], [0], [1], [0, 0, 1, 1], [], []>} : vector<2x64xf32>, vector<64x256xf32>, vector<2x256xf32> -> vector<2x256xf32>
    %172 = arith.addf %171, %67 : vector<2x256xf32>
    %173 = vector.extract_strided_slice %172 {offsets = [0, 0], sizes = [2, 192], strides = [1, 1]} : vector<2x256xf32> to vector<2x192xf32>
    %174 = arith.negf %173 : vector<2x192xf32>
    %175 = math.exp %174 : vector<2x192xf32>
    %cst_35 = arith.constant 1.000000e+00 : f32
    %176 = vector.broadcast %cst_35 : f32 to vector<2x192xf32>
    %177 = arith.addf %176, %175 : vector<2x192xf32>
    %178 = arith.divf %176, %177 : vector<2x192xf32>
    %179 = vector.extract_strided_slice %172 {offsets = [0, 192], sizes = [2, 64], strides = [1, 1]} : vector<2x256xf32> to vector<2x64xf32>
    %180 = math.tanh %179 : vector<2x64xf32>
    %181 = vector.extract_strided_slice %178 {offsets = [0, 64], sizes = [2, 64], strides = [1, 1]} : vector<2x192xf32> to vector<2x64xf32>
    %182 = arith.mulf %181, %167 : vector<2x64xf32>
    %183 = vector.extract_strided_slice %178 {offsets = [0, 0], sizes = [2, 64], strides = [1, 1]} : vector<2x192xf32> to vector<2x64xf32>
    %184 = arith.mulf %183, %180 : vector<2x64xf32>
    %185 = arith.addf %182, %184 : vector<2x64xf32>
    %186 = vector.extract_strided_slice %178 {offsets = [0, 128], sizes = [2, 64], strides = [1, 1]} : vector<2x192xf32> to vector<2x64xf32>
    %187 = math.tanh %185 : vector<2x64xf32>
    %188 = arith.mulf %186, %187 : vector<2x64xf32>
    %cst_36 = arith.constant dense<0.000000e+00> : vector<2x256xf32>
    %189 = tpu.matmul %188, %80, %cst_36 {dimension_numbers = #tpu.dot_dimension_numbers<[1], [0], [0], [1], [0, 0, 1, 1], [], []>} : vector<2x64xf32>, vector<64x256xf32>, vector<2x256xf32> -> vector<2x256xf32>
    %190 = arith.addf %189, %70 : vector<2x256xf32>
    %191 = vector.extract_strided_slice %190 {offsets = [0, 0], sizes = [2, 192], strides = [1, 1]} : vector<2x256xf32> to vector<2x192xf32>
    %192 = arith.negf %191 : vector<2x192xf32>
    %193 = math.exp %192 : vector<2x192xf32>
    %cst_37 = arith.constant 1.000000e+00 : f32
    %194 = vector.broadcast %cst_37 : f32 to vector<2x192xf32>
    %195 = arith.addf %194, %193 : vector<2x192xf32>
    %196 = arith.divf %194, %195 : vector<2x192xf32>
    %197 = vector.extract_strided_slice %190 {offsets = [0, 192], sizes = [2, 64], strides = [1, 1]} : vector<2x256xf32> to vector<2x64xf32>
    %198 = math.tanh %197 : vector<2x64xf32>
    %199 = vector.extract_strided_slice %196 {offsets = [0, 64], sizes = [2, 64], strides = [1, 1]} : vector<2x192xf32> to vector<2x64xf32>
    %200 = arith.mulf %199, %185 : vector<2x64xf32>
    %201 = vector.extract_strided_slice %196 {offsets = [0, 0], sizes = [2, 64], strides = [1, 1]} : vector<2x192xf32> to vector<2x64xf32>
    %202 = arith.mulf %201, %198 : vector<2x64xf32>
    %203 = arith.addf %200, %202 : vector<2x64xf32>
    %204 = vector.extract_strided_slice %196 {offsets = [0, 128], sizes = [2, 64], strides = [1, 1]} : vector<2x192xf32> to vector<2x64xf32>
    %205 = math.tanh %203 : vector<2x64xf32>
    %206 = arith.mulf %204, %205 : vector<2x64xf32>
    %cst_38 = arith.constant dense<0.000000e+00> : vector<2x256xf32>
    %207 = tpu.matmul %206, %80, %cst_38 {dimension_numbers = #tpu.dot_dimension_numbers<[1], [0], [0], [1], [0, 0, 1, 1], [], []>} : vector<2x64xf32>, vector<64x256xf32>, vector<2x256xf32> -> vector<2x256xf32>
    %208 = arith.addf %207, %73 : vector<2x256xf32>
    %209 = vector.extract_strided_slice %208 {offsets = [0, 0], sizes = [2, 192], strides = [1, 1]} : vector<2x256xf32> to vector<2x192xf32>
    %210 = arith.negf %209 : vector<2x192xf32>
    %211 = math.exp %210 : vector<2x192xf32>
    %cst_39 = arith.constant 1.000000e+00 : f32
    %212 = vector.broadcast %cst_39 : f32 to vector<2x192xf32>
    %213 = arith.addf %212, %211 : vector<2x192xf32>
    %214 = arith.divf %212, %213 : vector<2x192xf32>
    %215 = vector.extract_strided_slice %208 {offsets = [0, 192], sizes = [2, 64], strides = [1, 1]} : vector<2x256xf32> to vector<2x64xf32>
    %216 = math.tanh %215 : vector<2x64xf32>
    %217 = vector.extract_strided_slice %214 {offsets = [0, 64], sizes = [2, 64], strides = [1, 1]} : vector<2x192xf32> to vector<2x64xf32>
    %218 = arith.mulf %217, %203 : vector<2x64xf32>
    %219 = vector.extract_strided_slice %214 {offsets = [0, 0], sizes = [2, 64], strides = [1, 1]} : vector<2x192xf32> to vector<2x64xf32>
    %220 = arith.mulf %219, %216 : vector<2x64xf32>
    %221 = arith.addf %218, %220 : vector<2x64xf32>
    %222 = vector.extract_strided_slice %214 {offsets = [0, 128], sizes = [2, 64], strides = [1, 1]} : vector<2x192xf32> to vector<2x64xf32>
    %223 = math.tanh %221 : vector<2x64xf32>
    %224 = arith.mulf %222, %223 : vector<2x64xf32>
    %225 = vector.extract_strided_slice %98 {offsets = [0, 0], sizes = [2, 32], strides = [1, 1]} : vector<2x64xf32> to vector<2x32xf32>
    %226 = vector.extract_strided_slice %116 {offsets = [0, 0], sizes = [2, 32], strides = [1, 1]} : vector<2x64xf32> to vector<2x32xf32>
    %227 = vector.extract_strided_slice %134 {offsets = [0, 0], sizes = [2, 32], strides = [1, 1]} : vector<2x64xf32> to vector<2x32xf32>
    %228 = vector.extract_strided_slice %152 {offsets = [0, 0], sizes = [2, 32], strides = [1, 1]} : vector<2x64xf32> to vector<2x32xf32>
    %229 = vector.extract_strided_slice %170 {offsets = [0, 0], sizes = [2, 32], strides = [1, 1]} : vector<2x64xf32> to vector<2x32xf32>
    %230 = vector.extract_strided_slice %188 {offsets = [0, 0], sizes = [2, 32], strides = [1, 1]} : vector<2x64xf32> to vector<2x32xf32>
    %231 = vector.extract_strided_slice %206 {offsets = [0, 0], sizes = [2, 32], strides = [1, 1]} : vector<2x64xf32> to vector<2x32xf32>
    %232 = vector.extract_strided_slice %224 {offsets = [0, 0], sizes = [2, 32], strides = [1, 1]} : vector<2x64xf32> to vector<2x32xf32>
    %233 = tpu.concatenate %225, %226, %227, %228, %229, %230, %231, %232 in 0 : vector<2x32xf32>, vector<2x32xf32>, vector<2x32xf32>, vector<2x32xf32>, vector<2x32xf32>, vector<2x32xf32>, vector<2x32xf32>, vector<2x32xf32> -> vector<16x32xf32>
    %234 = vector.extract_strided_slice %224 {offsets = [0, 32], sizes = [2, 32], strides = [1, 1]} : vector<2x64xf32> to vector<2x32xf32>
    %235 = vector.extract_strided_slice %206 {offsets = [0, 32], sizes = [2, 32], strides = [1, 1]} : vector<2x64xf32> to vector<2x32xf32>
    %236 = vector.extract_strided_slice %188 {offsets = [0, 32], sizes = [2, 32], strides = [1, 1]} : vector<2x64xf32> to vector<2x32xf32>
    %237 = vector.extract_strided_slice %170 {offsets = [0, 32], sizes = [2, 32], strides = [1, 1]} : vector<2x64xf32> to vector<2x32xf32>
    %238 = vector.extract_strided_slice %152 {offsets = [0, 32], sizes = [2, 32], strides = [1, 1]} : vector<2x64xf32> to vector<2x32xf32>
    %239 = vector.extract_strided_slice %134 {offsets = [0, 32], sizes = [2, 32], strides = [1, 1]} : vector<2x64xf32> to vector<2x32xf32>
    %240 = vector.extract_strided_slice %116 {offsets = [0, 32], sizes = [2, 32], strides = [1, 1]} : vector<2x64xf32> to vector<2x32xf32>
    %241 = vector.extract_strided_slice %98 {offsets = [0, 32], sizes = [2, 32], strides = [1, 1]} : vector<2x64xf32> to vector<2x32xf32>
    %242 = tpu.concatenate %234, %235, %236, %237, %238, %239, %240, %241 in 0 : vector<2x32xf32>, vector<2x32xf32>, vector<2x32xf32>, vector<2x32xf32>, vector<2x32xf32>, vector<2x32xf32>, vector<2x32xf32>, vector<2x32xf32> -> vector<16x32xf32>
    %c0_40 = arith.constant 0 : index
    %c0_41 = arith.constant 0 : index
    %243 = vector.load %arg6[%c0_40, %c0_41] : memref<64x128xbf16, #tpu.memory_space<vmem>>, vector<64x128xbf16>
    %244 = arith.truncf %233 : vector<16x32xf32> to vector<16x32xbf16>
    %245 = vector.extract_strided_slice %243 {offsets = [0, 0], sizes = [32, 128], strides = [1, 1]} : vector<64x128xbf16> to vector<32x128xbf16>
    %cst_42 = arith.constant dense<0.000000e+00> : vector<16x128xf32>
    %246 = tpu.matmul %244, %245, %cst_42 {dimension_numbers = #tpu.dot_dimension_numbers<[1], [0], [0], [1], [0, 0, 1, 1], [], []>} : vector<16x32xbf16>, vector<32x128xbf16>, vector<16x128xf32> -> vector<16x128xf32>
    %247 = arith.truncf %242 : vector<16x32xf32> to vector<16x32xbf16>
    %248 = vector.extract_strided_slice %243 {offsets = [32, 0], sizes = [32, 128], strides = [1, 1]} : vector<64x128xbf16> to vector<32x128xbf16>
    %cst_43 = arith.constant dense<0.000000e+00> : vector<16x128xf32>
    %249 = tpu.matmul %247, %248, %cst_43 {dimension_numbers = #tpu.dot_dimension_numbers<[1], [0], [0], [1], [0, 0, 1, 1], [], []>} : vector<16x32xbf16>, vector<32x128xbf16>, vector<16x128xf32> -> vector<16x128xf32>
    %250 = arith.addf %246, %249 : vector<16x128xf32>
    %251 = vector.broadcast %3 : vector<1x128xf32> to vector<16x128xf32>
    %252 = arith.addf %250, %251 : vector<16x128xf32>
    %253 = vector.extract_strided_slice %252 {offsets = [0, 0], sizes = [16, 9], strides = [1, 1]} : vector<16x128xf32> to vector<16x9xf32>
    %c0_44 = arith.constant 0 : index
    %c0_45 = arith.constant 0 : index
    %254 = vector.load %arg8[%c0_44, %c0_45] : memref<16x9xf32, #tpu.memory_space<vmem>>, vector<16x9xf32>
    tpu.vector_store %arg8[%c0_44, %c0_45], %253 {strides = array<i32>} : memref<16x9xf32, #tpu.memory_space<vmem>>, vector<16x9xf32>,
    %cst_46 = arith.constant dense<0xFF800000> : vector<16xf32>
    %255 = vector.multi_reduction <maximumf>, %252, %cst_46 [1] : vector<16x128xf32> to vector<16xf32>
    %256 = vector.shape_cast %255 : vector<16xf32> to vector<16x1xf32>
    %257 = tpu.iota {dimensions = array<i32: 1>} : vector<16x128xi32>
    %258 = vector.broadcast %256 : vector<16x1xf32> to vector<16x128xf32>
    %259 = arith.cmpf oeq, %252, %258 : vector<16x128xf32>
    %c128_i32 = arith.constant 128 : i32
    %260 = vector.broadcast %c128_i32 : i32 to vector<16x128xi32>
    %261 = arith.select %259, %257, %260 : vector<16x128xi1>, vector<16x128xi32>
    %cst_47 = arith.constant dense<2147483647> : vector<16xi32>
    %262 = vector.multi_reduction <minsi>, %261, %cst_47 [1] : vector<16x128xi32> to vector<16xi32>
    %263 = vector.shape_cast %262 : vector<16xi32> to vector<16x1xi32>
    %c0_48 = arith.constant 0 : index
    %c0_49 = arith.constant 0 : index
    %264 = vector.load %arg9[%c0_48, %c0_49] : memref<16x1xi32, #tpu.memory_space<vmem>>, vector<16x1xi32>
    tpu.vector_store %arg9[%c0_48, %c0_49], %263 {strides = array<i32>} : memref<16x1xi32, #tpu.memory_space<vmem>>, vector<16x1xi32>,
    return
  }
}

</mosaic_0001>

<llo_original>
// kernel: cross_ner_forward.1
$region0: #{cross_ner_forward.1}
  #allocation0 [shape = 'u32[]', space=smem, size = 0x4, offset = 0x4, fixed_abs, tag = 'smem constant byte address 0x4 - core index']
  #allocation1 [shape = 'u32[144,128]{1,0:T(1,128)}', space=vmem, size = 0x12000, scoped, tag = 'internal scratch']
  %s0 = inlined_call_operand.vmem [shape: bf16[16,32], index: 0, kind: input, shape index: {}]
  %s1 = inlined_call_operand.vmem [shape: bf16[16,128], index: 1, kind: input, shape index: {}]
  %s2 = inlined_call_operand.vmem [shape: bf16[128,384], index: 2, kind: input, shape index: {}]
  %s3 = inlined_call_operand.vmem [shape: bf16[32,512], index: 3, kind: input, shape index: {}]
  %s4 = inlined_call_operand.vmem [shape: bf16[24,512], index: 4, kind: input, shape index: {}]
  %s5 = inlined_call_operand.vmem [shape: f32[64,256], index: 5, kind: input, shape index: {}]
  %s6 = inlined_call_operand.vmem [shape: bf16[64,128], index: 6, kind: input, shape index: {}]
  %s7 = inlined_call_operand.vmem [shape: f32[24,384], index: 7, kind: input, shape index: {}]
  %s8 = inlined_call_operand.vmem [shape: f32[16,9], index: 8, kind: output, shape index: {0}]
  %s9 = inlined_call_operand.vmem [shape: s32[16,1], index: 9, kind: output, shape index: {1}]
  %10 = xla_tuple %s8, %s9
  %s11 = sld [smem:[#allocation0]]
  $region50: #{cross_ner_forward.1} parent=0
    _
  %s13 = ssub.s32 1, %s11
  %s14 = scalar_select 0, %s13, %s11
  // Predicated region
  $region2: #{cross_ner_forward.1} parent=0 // pred_check
    _
  $region3: #{cross_ner_forward.1} parent=0 // pred_check_branch
    %16 = sbr.rel (0) target = $region5
  $region4: #{cross_ner_forward.1} parent=0 // pred_region
    _
  $region5: #{cross_ner_forward.1} parent=0 // pred_fallthru
    _
  // Predicated region
  $region6: #{cross_ner_forward.1} parent=0 // pred_check
    _
  $region7: #{cross_ner_forward.1} parent=0 // pred_check_branch
    %18 = sbr.rel (0) target = $region9
  $region8: #{cross_ner_forward.1} parent=0 // pred_region
    _
  $region9: #{cross_ner_forward.1} parent=0 // pred_fallthru
    _
  // Predicated region
  $region10: #{cross_ner_forward.1} parent=0 // pred_check
    _
  $region11: #{cross_ner_forward.1} parent=0 // pred_check_branch
    %20 = sbr.rel (0) target = $region13
  $region12: #{cross_ner_forward.1} parent=0 // pred_region
    _
  $region13: #{cross_ner_forward.1} parent=0 // pred_fallthru
    _
  // Predicated region
  $region14: #{cross_ner_forward.1} parent=0 // pred_check
    _
  $region15: #{cross_ner_forward.1} parent=0 // pred_check_branch
    %22 = sbr.rel (0) target = $region17
  $region16: #{cross_ner_forward.1} parent=0 // pred_region
    _
  $region17: #{cross_ner_forward.1} parent=0 // pred_fallthru
    _
  // Predicated region
  $region18: #{cross_ner_forward.1} parent=0 // pred_check
    _
  $region19: #{cross_ner_forward.1} parent=0 // pred_check_branch
    %24 = sbr.rel (0) target = $region21
  $region20: #{cross_ner_forward.1} parent=0 // pred_region
    _
  $region21: #{cross_ner_forward.1} parent=0 // pred_fallthru
    _
  // Predicated region
  $region22: #{cross_ner_forward.1} parent=0 // pred_check
    _
  $region23: #{cross_ner_forward.1} parent=0 // pred_check_branch
    %26 = sbr.rel (0) target = $region25
  $region24: #{cross_ner_forward.1} parent=0 // pred_region
    _
  $region25: #{cross_ner_forward.1} parent=0 // pred_fallthru
    _
  // Predicated region
  $region26: #{cross_ner_forward.1} parent=0 // pred_check
    _
  $region27: #{cross_ner_forward.1} parent=0 // pred_check_branch
    %28 = sbr.rel (0) target = $region29
  $region28: #{cross_ner_forward.1} parent=0 // pred_region
    _
  $region29: #{cross_ner_forward.1} parent=0 // pred_fallthru
    _
  // Predicated region
  $region30: #{cross_ner_forward.1} parent=0 // pred_check
    _
  $region31: #{cross_ner_forward.1} parent=0 // pred_check_branch
    %30 = sbr.rel (0) target = $region33
  $region32: #{cross_ner_forward.1} parent=0 // pred_region
    _
  $region33: #{cross_ner_forward.1} parent=0 // pred_fallthru
    _
  %v32 = vld [vmem:[%s7] sm:$0xff]
  %v33 = vld [vmem:[%s7 + $0x8] sm:$0xff]
  %v34 = vld [vmem:[%s7 + $0x10] sm:$0xff]
  %v35 = vld [vmem:[%s7 + $0x18] sm:$0xff]
  %v36 = vld [vmem:[%s7 + $0x30] sm:$0xff]
  %v37 = vld [vmem:[%s1] sm:$0xf]
  %v38 = vld [vmem:[%s1 + $0x4] sm:$0xf]
  %v39 = vld [vmem:[%s2] sm:$0xff]
  %v40 = vld [vmem:[%s2 + $0x8] sm:$0xf]
  %v41 = vld [vmem:[%s2 + $0xc] sm:$0xff]
  %v42 = vld [vmem:[%s2 + $0x14] sm:$0xf]
  %v43 = vld [vmem:[%s2 + $0x18] sm:$0xff]
  %v44 = vld [vmem:[%s2 + $0x20] sm:$0xf]
  %v45 = vld [vmem:[%s2 + $0x24] sm:$0xff]
  %v46 = vld [vmem:[%s2 + $0x2c] sm:$0xf]
  %v47 = vld [vmem:[%s2 + $0x30] sm:$0xff]
  %v48 = vld [vmem:[%s2 + $0x38] sm:$0xf]
  %v49 = vld [vmem:[%s2 + $0x3c] sm:$0xff]
  %v50 = vld [vmem:[%s2 + $0x44] sm:$0xf]
  %v51 = vld [vmem:[%s2 + $0x48] sm:$0xff]
  %v52 = vld [vmem:[%s2 + $0x50] sm:$0xf]
  %v53 = vld [vmem:[%s2 + $0x54] sm:$0xff]
  %v54 = vld [vmem:[%s2 + $0x5c] sm:$0xf]
  %v55 = vld [vmem:[%s2 + $0x60] sm:$0xff]
  %v56 = vld [vmem:[%s2 + $0x68] sm:$0xf]
  %v57 = vld [vmem:[%s2 + $0x6c] sm:$0xff]
  %v58 = vld [vmem:[%s2 + $0x74] sm:$0xf]
  %v59 = vld [vmem:[%s2 + $0x78] sm:$0xff]
  %v60 = vld [vmem:[%s2 + $0x80] sm:$0xf]
  %v61 = vld [vmem:[%s2 + $0x84] sm:$0xff]
  %v62 = vld [vmem:[%s2 + $0x8c] sm:$0xf]
  %v63 = vld [vmem:[%s2 + $0x90] sm:$0xff]
  %v64 = vld [vmem:[%s2 + $0x98] sm:$0xf]
  %v65 = vld [vmem:[%s2 + $0x9c] sm:$0xff]
  %v66 = vld [vmem:[%s2 + $0xa4] sm:$0xf]
  %v67 = vld [vmem:[%s2 + $0xa8] sm:$0xff]
  %v68 = vld [vmem:[%s2 + $0xb0] sm:$0xf]
  %v69 = vld [vmem:[%s2 + $0xb4] sm:$0xff]
  %v70 = vld [vmem:[%s2 + $0xbc] sm:$0xf]
  %v71 = vlaneseq
  %v72 = vshrl.u32 %v71, 7
  %v73 = vsub.s32 0, %v72
  %v74 = vrot.slane %v32, %v73
  %v75 = vlaneseq
  %v76 = vshrl.u32 %v75, 7
  %v77 = vsub.s32 0, %v76
  %v78 = vrot.slane %v33, %v77
  %v79 = vlaneseq
  %v80 = vshrl.u32 %v79, 7
  %v81 = vsub.s32 0, %v80
  %v82 = vrot.slane %v34, %v81
  %v85 = vunpack.c.l.b16 %v37
  %v86 = vunpack.c.l.b16 %v38
  %v87 = vpack.c.b16 %v86, %v85
  %v121 = vunpack.c.l.b16 %v39
  %v122 = vunpack.c.h.b16 %v39
  %v123 = vunpack.c.l.b16 %v40
  %v124 = vunpack.c.l.b16 %v41
  %v125 = vunpack.c.h.b16 %v41
  %v126 = vunpack.c.l.b16 %v42
  %v127 = vunpack.c.l.b16 %v43
  %v128 = vunpack.c.h.b16 %v43
  %v129 = vunpack.c.l.b16 %v44
  %v130 = vunpack.c.l.b16 %v45
  %v131 = vunpack.c.h.b16 %v45
  %v132 = vunpack.c.l.b16 %v46
  %v133 = vunpack.c.l.b16 %v47
  %v134 = vunpack.c.h.b16 %v47
  %v135 = vunpack.c.l.b16 %v48
  %v136 = vunpack.c.l.b16 %v49
  %v137 = vunpack.c.h.b16 %v49
  %v138 = vunpack.c.l.b16 %v50
  %v139 = vunpack.c.l.b16 %v51
  %v140 = vunpack.c.h.b16 %v51
  %v141 = vunpack.c.l.b16 %v52
  %v142 = vunpack.c.l.b16 %v53
  %v143 = vunpack.c.h.b16 %v53
  %v144 = vunpack.c.l.b16 %v54
  %v145 = vunpack.c.l.b16 %v55
  %v146 = vunpack.c.h.b16 %v55
  %v147 = vunpack.c.l.b16 %v56
  %v148 = vunpack.c.l.b16 %v57
  %v149 = vunpack.c.h.b16 %v57
  %v150 = vunpack.c.l.b16 %v58
  %v151 = vunpack.c.l.b16 %v59
  %v152 = vunpack.c.h.b16 %v59
  %v153 = vunpack.c.l.b16 %v60
  %v154 = vunpack.c.l.b16 %v61
  %v155 = vunpack.c.h.b16 %v61
  %v156 = vunpack.c.l.b16 %v62
  %v157 = vunpack.c.l.b16 %v63
  %v158 = vunpack.c.h.b16 %v63
  %v159 = vunpack.c.l.b16 %v64
  %v160 = vunpack.c.l.b16 %v65
  %v161 = vunpack.c.h.b16 %v65
  %v162 = vunpack.c.l.b16 %v66
  %v163 = vunpack.c.l.b16 %v67
  %v164 = vunpack.c.h.b16 %v67
  %v165 = vunpack.c.l.b16 %v68
  %v166 = vunpack.c.l.b16 %v69
  %v167 = vunpack.c.h.b16 %v69
  %v168 = vunpack.c.l.b16 %v70
  %v169 = vpack.c.b16 %v124, %v121
  %v170 = vpack.c.b16 %v125, %v122
  %v171 = vpack.c.b16 %v126, %v123
  %v172 = vpack.c.b16 %v130, %v127
  %v173 = vpack.c.b16 %v131, %v128
  %v174 = vpack.c.b16 %v132, %v129
  %v175 = vpack.c.b16 %v136, %v133
  %v176 = vpack.c.b16 %v137, %v134
  %v177 = vpack.c.b16 %v138, %v135
  %v178 = vpack.c.b16 %v142, %v139
  %v179 = vpack.c.b16 %v143, %v140
  %v180 = vpack.c.b16 %v144, %v141
  %v181 = vpack.c.b16 %v148, %v145
  %v182 = vpack.c.b16 %v149, %v146
  %v183 = vpack.c.b16 %v150, %v147
  %v184 = vpack.c.b16 %v154, %v151
  %v185 = vpack.c.b16 %v155, %v152
  %v186 = vpack.c.b16 %v156, %v153
  %v187 = vpack.c.b16 %v160, %v157
  %v188 = vpack.c.b16 %v161, %v158
  %v189 = vpack.c.b16 %v162, %v159
  %v190 = vpack.c.b16 %v166, %v163
  %v191 = vpack.c.b16 %v167, %v164
  %v192 = vpack.c.b16 %v168, %v165
  %217 = vmatprep.subr.bf16.mxu0 %v170
  %218 = vmatpush1.bf16.msra.mxu0 %v169
  %219 = vmatprep.subr.bf16.mxu0 %v173
  %220 = vmatpush1.bf16.msra.mxu0 %v172
  %221 = vmatprep.subr.bf16.mxu0 %v176
  %222 = vmatpush1.bf16.msra.mxu0 %v175
  %223 = vmatprep.subr.bf16.mxu0 %v179
  %224 = vmatpush1.bf16.msra.mxu0 %v178
  %225 = vmatprep.subr.bf16.mxu0 %v182
  %226 = vmatpush1.bf16.msra.mxu0 %v181
  %227 = vmatprep.subr.bf16.mxu0 %v185
  %228 = vmatpush1.bf16.msra.mxu0 %v184
  %229 = vmatprep.subr.bf16.mxu0 %v188
  %230 = vmatpush1.bf16.msra.mxu0 %v187
  %231 = vmatprep.subr.bf16.mxu0 %v191
  %232 = vmatpush1.bf16.msra.mxu0 %v190
  %233 = vmatprep.subr.bf16.mxu0 0
  %234 = vmatpush1.bf16.msra.mxu0 0
  %235 = vmatprep.subr.bf16.mxu0 0
  %236 = vmatpush1.bf16.msra.mxu0 0
  %237 = vmatprep.subr.bf16.mxu0 0
  %238 = vmatpush1.bf16.msra.mxu0 0
  %239 = vmatprep.subr.bf16.mxu0 0
  %240 = vmatpush1.bf16.msra.mxu0 0
  %241 = vmatprep.subr.bf16.mxu0 0
  %242 = vmatpush1.bf16.msra.mxu0 0
  %243 = vmatprep.subr.bf16.mxu0 0
  %244 = vmatpush1.bf16.msra.mxu0 0
  %245 = vmatprep.subr.bf16.mxu0 0
  %246 = vmatpush1.bf16.msra.mxu0 0
  %247 = vmatprep.subr.bf16.mxu0 0
  %248 = vmatpush1.bf16.msra.mxu0 0
  %249 = vmatprep.mubr.bf16.mxu0 0
  %250 = vmatmul.mubr.bf16.gmra.mrb[0].mxu0 %v87
  %v251 = vpop.f32.mrb[0].mxu0
  %v252 = vadd.f32 %v74, %v251
  %v253 = vpop.f32.mrb[0].mxu0
  %v254 = vadd.f32 %v78, %v253
  %v255 = vpop.f32.mrb[0].mxu0
  %v256 = vadd.f32 %v74, %v255
  %v257 = vpop.f32.mrb[0].mxu0
  %v258 = vadd.f32 %v78, %v257
  %259 = vdwg.mxu0
  %260 = vmatprep.subr.bf16.mxu0 0
  %261 = vmatpush1.bf16.msra.mxu0 %v171
  %262 = vmatprep.subr.bf16.mxu0 0
  %263 = vmatpush1.bf16.msra.mxu0 %v174
  %264 = vmatprep.subr.bf16.mxu0 0
  %265 = vmatpush1.bf16.msra.mxu0 %v177
  %266 = vmatprep.subr.bf16.mxu0 0
  %267 = vmatpush1.bf16.msra.mxu0 %v180
  %268 = vmatprep.subr.bf16.mxu0 0
  %269 = vmatpush1.bf16.msra.mxu0 %v183
  %270 = vmatprep.subr.bf16.mxu0 0
  %271 = vmatpush1.bf16.msra.mxu0 %v186
  %272 = vmatprep.subr.bf16.mxu0 0
  %273 = vmatpush1.bf16.msra.mxu0 %v189
  %274 = vmatprep.subr.bf16.mxu0 0
  %275 = vmatpush1.bf16.msra.mxu0 %v192
  %276 = vmatprep.subr.bf16.mxu0 0
  %277 = vmatpush1.bf16.msra.mxu0 0
  %278 = vmatprep.subr.bf16.mxu0 0
  %279 = vmatpush1.bf16.msra.mxu0 0
  %280 = vmatprep.subr.bf16.mxu0 0
  %281 = vmatpush1.bf16.msra.mxu0 0
  %282 = vmatprep.subr.bf16.mxu0 0
  %283 = vmatpush1.bf16.msra.mxu0 0
  %284 = vmatprep.subr.bf16.mxu0 0
  %285 = vmatpush1.bf16.msra.mxu0 0
  %286 = vmatprep.subr.bf16.mxu0 0
  %287 = vmatpush1.bf16.msra.mxu0 0
  %288 = vmatprep.subr.bf16.mxu0 0
  %289 = vmatpush1.bf16.msra.mxu0 0
  %290 = vmatprep.subr.bf16.mxu0 0
  %291 = vmatpush1.bf16.msra.mxu0 0
  %292 = vmatprep.mubr.bf16.mxu0 0
  %293 = vmatmul.mubr.bf16.gmra.mrb[0].mxu0 %v87
  %v294 = vpop.f32.mrb[0].mxu0
  %v295 = vadd.f32 %v82, %v294
  %v296 = vpop.f32.mrb[0].mxu0
  %v297 = vpop.f32.mrb[0].mxu0
  %v298 = vadd.f32 %v82, %v297
  %v299 = vpop.f32.mrb[0].mxu0
  %300 = vdwg.mxu0
  %v301 = vmax.f32 %v252, 0.0
  %v302 = vmax.f32 %v254, 0.0
  %v303 = vmax.f32 %v295, 0.0
  %v304 = vmax.f32 %v256, 0.0
  %v305 = vmax.f32 %v258, 0.0
  %v306 = vmax.f32 %v298, 0.0
  %307 = vrot.lane.b32.xlu0 %v301, 16
  %v308 = vpop.permute.xlu0 %307
  %309 = vrot.lane.b32.xlu0 %v304, 16
  %v310 = vpop.permute.xlu0 %309
  %v311 = vmax.f32 %v301, %v308
  %v312 = vmax.f32 %v304, %v310
  %313 = vrot.lane.b32.xlu0 %v311, 32
  %v314 = vpop.permute.xlu0 %313
  %315 = vrot.lane.b32.xlu0 %v312, 32
  %v316 = vpop.permute.xlu0 %315
  %v317 = vmax.f32 %v311, %v314
  %v318 = vmax.f32 %v312, %v316
  %319 = vrot.lane.b32.xlu0 %v317, 64
  %v320 = vpop.permute.xlu0 %319
  %321 = vrot.lane.b32.xlu0 %v318, 64
  %v322 = vpop.permute.xlu0 %321
  %v323 = vmax.f32 %v317, %v320
  %v324 = vmax.f32 %v318, %v322
  %325 = vrot.lane.b32.xlu0 %v302, 16
  %v326 = vpop.permute.xlu0 %325
  %327 = vrot.lane.b32.xlu0 %v305, 16
  %v328 = vpop.permute.xlu0 %327
  %v329 = vmax.f32 %v302, %v326
  %v330 = vmax.f32 %v305, %v328
  %331 = vrot.lane.b32.xlu0 %v329, 32
  %v332 = vpop.permute.xlu0 %331
  %333 = vrot.lane.b32.xlu0 %v330, 32
  %v334 = vpop.permute.xlu0 %333
  %v335 = vmax.f32 %v329, %v332
  %v336 = vmax.f32 %v330, %v334
  %337 = vrot.lane.b32.xlu0 %v335, 64
  %v338 = vpop.permute.xlu0 %337
  %339 = vrot.lane.b32.xlu0 %v336, 64
  %v340 = vpop.permute.xlu0 %339
  %v341 = vmax.f32 %v335, %v338
  %v342 = vmax.f32 %v336, %v340
  %343 = vrot.lane.b32.xlu0 %v303, 16
  %v344 = vpop.permute.xlu0 %343
  %345 = vrot.lane.b32.xlu0 %v306, 16
  %v346 = vpop.permute.xlu0 %345
  %v347 = vmax.f32 %v303, %v344
  %v348 = vmax.f32 %v306, %v346
  %349 = vrot.lane.b32.xlu0 %v347, 32
  %v350 = vpop.permute.xlu0 %349
  %351 = vrot.lane.b32.xlu0 %v348, 32
  %v352 = vpop.permute.xlu0 %351
  %v353 = vmax.f32 %v347, %v350
  %v354 = vmax.f32 %v348, %v352
  %355 = vrot.lane.b32.xlu0 %v353, 64
  %v356 = vpop.permute.xlu0 %355
  %357 = vrot.lane.b32.xlu0 %v354, 64
  %v358 = vpop.permute.xlu0 %357
  %v359 = vmax.f32 %v353, %v356
  %v360 = vmax.f32 %v354, %v358
  %363 = vrot.lane.b32.xlu0 %v341, 8
  %v364 = vpop.permute.xlu0 %363
  %365 = vrot.lane.b32.xlu0 %v342, 8
  %v366 = vpop.permute.xlu0 %365
  %371 = vrot.lane.b32.xlu0 %v359, 16
  %v372 = vpop.permute.xlu0 %371
  %373 = vrot.lane.b32.xlu0 %v360, 16
  %v374 = vpop.permute.xlu0 %373
  %vm377 = vcmask 64512
  %v378 = vsel %vm377, %v323, %v364
  %v379 = vsel %vm377, %v324, %v366
  %vm380 = vcmask 130048
  %v381 = vsel %vm380, %v378, %v372
  %v382 = vsel %vm380, %v379, %v374
  %v383 = vld [vmem:[%s0] sm:$0xf]
  %v384 = vld [vmem:[%s0 + $0x4] sm:$0xf]
  %v385 = vld [vmem:[%s3] sm:$0xff]
  %v386 = vld [vmem:[%s3 + $0x8] sm:$0xff]
  %v387 = vld [vmem:[%s3 + $0x10] sm:$0xff]
  %v388 = vld [vmem:[%s3 + $0x18] sm:$0xff]
  %v389 = vld [vmem:[%s3 + $0x20] sm:$0xff]
  %v390 = vld [vmem:[%s3 + $0x28] sm:$0xff]
  %v391 = vld [vmem:[%s3 + $0x30] sm:$0xff]
  %v392 = vld [vmem:[%s3 + $0x38] sm:$0xff]
  %v393 = vpack.c.bf16 %v382, %v381
  %v394 = vld [vmem:[%s4] sm:$0xff]
  %v395 = vld [vmem:[%s4 + $0x8] sm:$0xff]
  %v396 = vld [vmem:[%s4 + $0x10] sm:$0xff]
  %v397 = vld [vmem:[%s4 + $0x18] sm:$0xff]
  %v398 = vld [vmem:[%s4 + $0x20] sm:$0xff]
  %v399 = vld [vmem:[%s4 + $0x28] sm:$0xff]
  %v406 = vunpack.c.l.b16 %v394
  %v407 = vunpack.c.h.b16 %v394
  %v408 = vunpack.c.l.b16 %v395
  %v409 = vunpack.c.h.b16 %v395
  %v410 = vunpack.c.l.b16 %v396
  %v411 = vunpack.c.h.b16 %v396
  %v412 = vunpack.c.l.b16 %v397
  %v413 = vunpack.c.h.b16 %v397
  %v414 = vunpack.c.l.b16 %v398
  %v415 = vunpack.c.h.b16 %v398
  %v416 = vunpack.c.l.b16 %v399
  %v417 = vunpack.c.h.b16 %v399
  %v418 = vpack.c.b16 %v410, %v406
  %v419 = vpack.c.b16 %v411, %v407
  %v420 = vpack.c.b16 %v412, %v408
  %v421 = vpack.c.b16 %v413, %v409
  %v422 = vpack.c.b16 %v414, %v414
  %v423 = vpack.c.b16 %v415, %v415
  %v424 = vpack.c.b16 %v416, %v416
  %v425 = vpack.c.b16 %v417, %v417
  %vm430 = vcmask 195584
  %v432 = vsel %vm430, %v393, 0
  %vm434 = vcmask 1043456
  %v436 = vsel %vm434, %v422, 0
  %v439 = vsel %vm434, %v423, 0
  %v442 = vsel %vm434, %v424, 0
  %v445 = vsel %vm434, %v425, 0
  %447 = vmatprep.subr.bf16.mxu0 %v419
  %448 = vmatpush1.bf16.msra.mxu0 %v418
  %449 = vmatprep.subr.bf16.mxu0 %v439
  %450 = vmatpush1.bf16.msra.mxu0 %v436
  %451 = vmatprep.subr.bf16.mxu0 0
  %452 = vmatpush1.bf16.msra.mxu0 0
  %453 = vmatprep.subr.bf16.mxu0 0
  %454 = vmatpush1.bf16.msra.mxu0 0
  %455 = vmatprep.subr.bf16.mxu0 0
  %456 = vmatpush1.bf16.msra.mxu0 0
  %457 = vmatprep.subr.bf16.mxu0 0
  %458 = vmatpush1.bf16.msra.mxu0 0
  %459 = vmatprep.subr.bf16.mxu0 0
  %460 = vmatpush1.bf16.msra.mxu0 0
  %461 = vmatprep.subr.bf16.mxu0 0
  %462 = vmatpush1.bf16.msra.mxu0 0
  %463 = vmatprep.subr.bf16.mxu0 0
  %464 = vmatpush1.bf16.msra.mxu0 0
  %465 = vmatprep.subr.bf16.mxu0 0
  %466 = vmatpush1.bf16.msra.mxu0 0
  %467 = vmatprep.subr.bf16.mxu0 0
  %468 = vmatpush1.bf16.msra.mxu0 0
  %469 = vmatprep.subr.bf16.mxu0 0
  %470 = vmatpush1.bf16.msra.mxu0 0
  %471 = vmatprep.subr.bf16.mxu0 0
  %472 = vmatpush1.bf16.msra.mxu0 0
  %473 = vmatprep.subr.bf16.mxu0 0
  %474 = vmatpush1.bf16.msra.mxu0 0
  %475 = vmatprep.subr.bf16.mxu0 0
  %476 = vmatpush1.bf16.msra.mxu0 0
  %477 = vmatprep.subr.bf16.mxu0 0
  %478 = vmatpush1.bf16.msra.mxu0 0
  %479 = vmatprep.mubr.bf16.mxu0 0
  %480 = vmatmul.mubr.bf16.gmra.mrb[0].mxu0 %v432
  %v481 = vpop.f32.mrb[0].mxu0
  %v482 = vadd.f32 0.0, %v481
  %v483 = vpop.f32.mrb[0].mxu0
  %v484 = vadd.f32 0.0, %v483
  %v485 = vpop.f32.mrb[0].mxu0
  %v486 = vadd.f32 0.0, %v485
  %v487 = vpop.f32.mrb[0].mxu0
  %v488 = vadd.f32 0.0, %v487
  %489 = vdwg.mxu0
  %490 = vmatprep.subr.bf16.mxu0 %v421
  %491 = vmatpush1.bf16.msra.mxu0 %v420
  %492 = vmatprep.subr.bf16.mxu0 %v445
  %493 = vmatpush1.bf16.msra.mxu0 %v442
  %494 = vmatprep.subr.bf16.mxu0 0
  %495 = vmatpush1.bf16.msra.mxu0 0
  %496 = vmatprep.subr.bf16.mxu0 0
  %497 = vmatpush1.bf16.msra.mxu0 0
  %498 = vmatprep.subr.bf16.mxu0 0
  %499 = vmatpush1.bf16.msra.mxu0 0
  %500 = vmatprep.subr.bf16.mxu0 0
  %501 = vmatpush1.bf16.msra.mxu0 0
  %502 = vmatprep.subr.bf16.mxu0 0
  %503 = vmatpush1.bf16.msra.mxu0 0
  %504 = vmatprep.subr.bf16.mxu0 0
  %505 = vmatpush1.bf16.msra.mxu0 0
  %506 = vmatprep.subr.bf16.mxu0 0
  %507 = vmatpush1.bf16.msra.mxu0 0
  %508 = vmatprep.subr.bf16.mxu0 0
  %509 = vmatpush1.bf16.msra.mxu0 0
  %510 = vmatprep.subr.bf16.mxu0 0
  %511 = vmatpush1.bf16.msra.mxu0 0
  %512 = vmatprep.subr.bf16.mxu0 0
  %513 = vmatpush1.bf16.msra.mxu0 0
  %514 = vmatprep.subr.bf16.mxu0 0
  %515 = vmatpush1.bf16.msra.mxu0 0
  %516 = vmatprep.subr.bf16.mxu0 0
  %517 = vmatpush1.bf16.msra.mxu0 0
  %518 = vmatprep.subr.bf16.mxu0 0
  %519 = vmatpush1.bf16.msra.mxu0 0
  %520 = vmatprep.subr.bf16.mxu0 0
  %521 = vmatpush1.bf16.msra.mxu0 0
  %522 = vmatprep.mubr.bf16.mxu0 0
  %523 = vmatmul.mubr.bf16.gmra.mrb[0].mxu0 %v432
  %v524 = vpop.f32.mrb[0].mxu0
  %v525 = vadd.f32 0.0, %v524
  %v526 = vpop.f32.mrb[0].mxu0
  %v527 = vadd.f32 0.0, %v526
  %v528 = vpop.f32.mrb[0].mxu0
  %v529 = vadd.f32 0.0, %v528
  %v530 = vpop.f32.mrb[0].mxu0
  %v531 = vadd.f32 0.0, %v530
  %532 = vdwg.mxu0
  %v535 = vunpack.c.l.b16 %v383
  %v536 = vunpack.c.l.b16 %v384
  %v537 = vpack.c.b16 %v536, %v535
  %v546 = vunpack.c.l.b16 %v385
  %v547 = vunpack.c.h.b16 %v385
  %v548 = vunpack.c.l.b16 %v386
  %v549 = vunpack.c.h.b16 %v386
  %v550 = vunpack.c.l.b16 %v387
  %v551 = vunpack.c.h.b16 %v387
  %v552 = vunpack.c.l.b16 %v388
  %v553 = vunpack.c.h.b16 %v388
  %v554 = vunpack.c.l.b16 %v389
  %v555 = vunpack.c.h.b16 %v389
  %v556 = vunpack.c.l.b16 %v390
  %v557 = vunpack.c.h.b16 %v390
  %v558 = vunpack.c.l.b16 %v391
  %v559 = vunpack.c.h.b16 %v391
  %v560 = vunpack.c.l.b16 %v392
  %v561 = vunpack.c.h.b16 %v392
  %v562 = vpack.c.b16 %v550, %v546
  %v563 = vpack.c.b16 %v551, %v547
  %v564 = vpack.c.b16 %v552, %v548
  %v565 = vpack.c.b16 %v553, %v549
  %v566 = vpack.c.b16 %v558, %v554
  %v567 = vpack.c.b16 %v559, %v555
  %v568 = vpack.c.b16 %v560, %v556
  %v569 = vpack.c.b16 %v561, %v557
  %vm578 = vcmask 261120
  %v580 = vsel %vm578, %v537, 0
  %582 = vmatprep.subr.bf16.mxu0 %v563
  %583 = vmatpush1.bf16.msra.mxu0 %v562
  %584 = vmatprep.subr.bf16.mxu0 %v567
  %585 = vmatpush1.bf16.msra.mxu0 %v566
  %586 = vmatprep.subr.bf16.mxu0 0
  %587 = vmatpush1.bf16.msra.mxu0 0
  %588 = vmatprep.subr.bf16.mxu0 0
  %589 = vmatpush1.bf16.msra.mxu0 0
  %590 = vmatprep.subr.bf16.mxu0 0
  %591 = vmatpush1.bf16.msra.mxu0 0
  %592 = vmatprep.subr.bf16.mxu0 0
  %593 = vmatpush1.bf16.msra.mxu0 0
  %594 = vmatprep.subr.bf16.mxu0 0
  %595 = vmatpush1.bf16.msra.mxu0 0
  %596 = vmatprep.subr.bf16.mxu0 0
  %597 = vmatpush1.bf16.msra.mxu0 0
  %598 = vmatprep.subr.bf16.mxu0 0
  %599 = vmatpush1.bf16.msra.mxu0 0
  %600 = vmatprep.subr.bf16.mxu0 0
  %601 = vmatpush1.bf16.msra.mxu0 0
  %602 = vmatprep.subr.bf16.mxu0 0
  %603 = vmatpush1.bf16.msra.mxu0 0
  %604 = vmatprep.subr.bf16.mxu0 0
  %605 = vmatpush1.bf16.msra.mxu0 0
  %606 = vmatprep.subr.bf16.mxu0 0
  %607 = vmatpush1.bf16.msra.mxu0 0
  %608 = vmatprep.subr.bf16.mxu0 0
  %609 = vmatpush1.bf16.msra.mxu0 0
  %610 = vmatprep.subr.bf16.mxu0 0
  %611 = vmatpush1.bf16.msra.mxu0 0
  %612 = vmatprep.subr.bf16.mxu0 0
  %613 = vmatpush1.bf16.msra.mxu0 0
  %614 = vmatprep.mubr.bf16.mxu0 0
  %615 = vmatmul.mubr.bf16.gmra.mrb[0].mxu0 %v580
  %v616 = vpop.f32.mrb[0].mxu0
  %v617 = vadd.f32 %v482, %v616
  %v618 = vpop.f32.mrb[0].mxu0
  %v619 = vadd.f32 %v484, %v618
  %v620 = vpop.f32.mrb[0].mxu0
  %v621 = vadd.f32 %v486, %v620
  %v622 = vpop.f32.mrb[0].mxu0
  %v623 = vadd.f32 %v488, %v622
  %624 = vdwg.mxu0
  %625 = vmatprep.subr.bf16.mxu0 %v565
  %626 = vmatpush1.bf16.msra.mxu0 %v564
  %627 = vmatprep.subr.bf16.mxu0 %v569
  %628 = vmatpush1.bf16.msra.mxu0 %v568
  %629 = vmatprep.subr.bf16.mxu0 0
  %630 = vmatpush1.bf16.msra.mxu0 0
  %631 = vmatprep.subr.bf16.mxu0 0
  %632 = vmatpush1.bf16.msra.mxu0 0
  %633 = vmatprep.subr.bf16.mxu0 0
  %634 = vmatpush1.bf16.msra.mxu0 0
  %635 = vmatprep.subr.bf16.mxu0 0
  %636 = vmatpush1.bf16.msra.mxu0 0
  %637 = vmatprep.subr.bf16.mxu0 0
  %638 = vmatpush1.bf16.msra.mxu0 0
  %639 = vmatprep.subr.bf16.mxu0 0
  %640 = vmatpush1.bf16.msra.mxu0 0
  %641 = vmatprep.subr.bf16.mxu0 0
  %642 = vmatpush1.bf16.msra.mxu0 0
  %643 = vmatprep.subr.bf16.mxu0 0
  %644 = vmatpush1.bf16.msra.mxu0 0
  %645 = vmatprep.subr.bf16.mxu0 0
  %646 = vmatpush1.bf16.msra.mxu0 0
  %647 = vmatprep.subr.bf16.mxu0 0
  %648 = vmatpush1.bf16.msra.mxu0 0
  %649 = vmatprep.subr.bf16.mxu0 0
  %650 = vmatpush1.bf16.msra.mxu0 0
  %651 = vmatprep.subr.bf16.mxu0 0
  %652 = vmatpush1.bf16.msra.mxu0 0
  %653 = vmatprep.subr.bf16.mxu0 0
  %654 = vmatpush1.bf16.msra.mxu0 0
  %655 = vmatprep.subr.bf16.mxu0 0
  %656 = vmatpush1.bf16.msra.mxu0 0
  %657 = vmatprep.mubr.bf16.mxu0 0
  %658 = vmatmul.mubr.bf16.gmra.mrb[0].mxu0 %v580
  %v659 = vpop.f32.mrb[0].mxu0
  %v660 = vadd.f32 %v525, %v659
  %v661 = vpop.f32.mrb[0].mxu0
  %v662 = vadd.f32 %v527, %v661
  %v663 = vpop.f32.mrb[0].mxu0
  %v664 = vadd.f32 %v529, %v663
  %v665 = vpop.f32.mrb[0].mxu0
  %v666 = vadd.f32 %v531, %v665
  %667 = vdwg.mxu0
  %v668 = vlaneseq
  %v669 = vshrl.u32 %v668, 7
  %v670 = vsub.s32 1, %v669
  %v671 = vrot.slane %v32, %v670
  %v672 = vlaneseq
  %v673 = vshrl.u32 %v672, 7
  %v674 = vsub.s32 1, %v673
  %v675 = vrot.slane %v33, %v674
  %v676 = vadd.f32 %v617, %v671
  %v677 = vadd.f32 %v619, %v675
  %v678 = vadd.f32 %v621, %v671
  %v679 = vadd.f32 %v623, %v675
  %v682 = vrot.slane %v664, 6
  %v683 = vrot.slane %v666, 6
  %v686 = vadd.f32 %v676, %v682
  %v687 = vadd.f32 %v677, %v683
  %v688 = vrot.slane %v664, 2
  %v689 = vrot.slane %v666, 2
  %v692 = vadd.f32 %v676, %v688
  %v693 = vadd.f32 %v677, %v689
  %v696 = vrot.slane %v660, 6
  %v697 = vrot.slane %v662, 6
  %v700 = vadd.f32 %v678, %v696
  %v701 = vadd.f32 %v679, %v697
  %v702 = vrot.slane %v660, 2
  %v703 = vrot.slane %v662, 2
  %v706 = vadd.f32 %v678, %v702
  %v707 = vadd.f32 %v679, %v703
  %v708 = vlaneseq
  %v709 = vshrl.u32 %v708, 7
  %v710 = vsub.s32 3, %v709
  %v711 = vrot.slane %v32, %v710
  %v713 = vrot.slane %v32, 4
  %vm716 = vcmask 1041408
  %v717 = vrot.slane %v32, 6
  %v718 = vrot.slane %v35, 6
  %v719 = vsel %vm716, %v717, %v718
  %v720 = vrot.slane %v36, 6
  %v721 = vsel %vm716, %v718, %v720
  %v724 = vsel %vm380, %v713, 0
  %726 = vmatprep.subr.mxu0 0.0
  %727 = vmatpush1.msra.mxu0 %v719
  %728 = vmatprep.subr.mxu0 0.0
  %729 = vmatpush1.msra.mxu0 %v721
  %730 = vmatprep.subr.mxu0 0.0
  %731 = vmatpush1.msra.mxu0 0.0
  %732 = vmatprep.subr.mxu0 0.0
  %733 = vmatpush1.msra.mxu0 0.0
  %734 = vmatprep.subr.mxu0 0.0
  %735 = vmatpush1.msra.mxu0 0.0
  %736 = vmatprep.subr.mxu0 0.0
  %737 = vmatpush1.msra.mxu0 0.0
  %738 = vmatprep.subr.mxu0 0.0
  %739 = vmatpush1.msra.mxu0 0.0
  %740 = vmatprep.subr.mxu0 0.0
  %741 = vmatpush1.msra.mxu0 0.0
  %742 = vmatprep.subr.mxu0 0.0
  %743 = vmatpush1.msra.mxu0 0.0
  %744 = vmatprep.subr.mxu0 0.0
  %745 = vmatpush1.msra.mxu0 0.0
  %746 = vmatprep.subr.mxu0 0.0
  %747 = vmatpush1.msra.mxu0 0.0
  %748 = vmatprep.subr.mxu0 0.0
  %749 = vmatpush1.msra.mxu0 0.0
  %750 = vmatprep.subr.mxu0 0.0
  %751 = vmatpush1.msra.mxu0 0.0
  %752 = vmatprep.subr.mxu0 0.0
  %753 = vmatpush1.msra.mxu0 0.0
  %754 = vmatprep.subr.mxu0 0.0
  %755 = vmatpush1.msra.mxu0 0.0
  %756 = vmatprep.subr.mxu0 0.0
  %757 = vmatpush1.msra.mxu0 0.0
  %758 = vmatprep.subr.mxu0 0.0
  %759 = vmatpush1.msra.mxu0 0.0
  %760 = vmatprep.subr.mxu0 0.0
  %761 = vmatpush1.msra.mxu0 0.0
  %762 = vmatprep.subr.mxu0 0.0
  %763 = vmatpush1.msra.mxu0 0.0
  %764 = vmatprep.subr.mxu0 0.0
  %765 = vmatpush1.msra.mxu0 0.0
  %766 = vmatprep.subr.mxu0 0.0
  %767 = vmatpush1.msra.mxu0 0.0
  %768 = vmatprep.subr.mxu0 0.0
  %769 = vmatpush1.msra.mxu0 0.0
  %770 = vmatprep.subr.mxu0 0.0
  %771 = vmatpush1.msra.mxu0 0.0
  %772 = vmatprep.subr.mxu0 0.0
  %773 = vmatpush1.msra.mxu0 0.0
  %774 = vmatprep.subr.mxu0 0.0
  %775 = vmatpush1.msra.mxu0 0.0
  %776 = vmatprep.subr.mxu0 0.0
  %777 = vmatpush1.msra.mxu0 0.0
  %778 = vmatprep.subr.mxu0 0.0
  %779 = vmatpush1.msra.mxu0 0.0
  %780 = vmatprep.subr.mxu0 0.0
  %781 = vmatpush1.msra.mxu0 0.0
  %782 = vmatprep.subr.mxu0 0.0
  %783 = vmatpush1.msra.mxu0 0.0
  %784 = vmatprep.subr.mxu0 0.0
  %785 = vmatpush1.msra.mxu0 0.0
  %786 = vmatprep.subr.mxu0 0.0
  %787 = vmatpush1.msra.mxu0 0.0
  %788 = vmatprep.subr.mxu0 0.0
  %789 = vmatpush1.msra.mxu0 0.0
  %790 = vmatprep.mubr.f32.mxu0 0.0
  %791 = vmatmul.mubr.f32.gmra.mrb[0].mxu0 %v724
  %v792 = vpop.f32.mrb[0].mxu0
  %v793 = vadd.f32 %v711, %v792
  %v794 = vpop.f32.mrb[0].mxu0
  %795 = vdwg.mxu0
  %v796 = vtanh.pop %v793
  %798 = vrot.lane.b32.xlu0 %v796, 32
  %v799 = vpop.permute.xlu0 %798
  %v801 = vsel %vm578, %v796, %v799
  %v802 = vld [vmem:[%s5] sm:$0xff]
  %v803 = vld [vmem:[%s5 + $0x8] sm:$0xff]
  %v804 = vld [vmem:[%s5 + $0x10] sm:$0xff]
  %v805 = vld [vmem:[%s5 + $0x18] sm:$0xff]
  %v806 = vld [vmem:[%s5 + $0x20] sm:$0xff]
  %v807 = vld [vmem:[%s5 + $0x28] sm:$0xff]
  %v808 = vld [vmem:[%s5 + $0x30] sm:$0xff]
  %v809 = vld [vmem:[%s5 + $0x38] sm:$0xff]
  %v810 = vld [vmem:[%s5 + $0x40] sm:$0xff]
  %v811 = vld [vmem:[%s5 + $0x48] sm:$0xff]
  %v812 = vld [vmem:[%s5 + $0x50] sm:$0xff]
  %v813 = vld [vmem:[%s5 + $0x58] sm:$0xff]
  %v814 = vld [vmem:[%s5 + $0x60] sm:$0xff]
  %v815 = vld [vmem:[%s5 + $0x68] sm:$0xff]
  %v816 = vld [vmem:[%s5 + $0x70] sm:$0xff]
  %v817 = vld [vmem:[%s5 + $0x78] sm:$0xff]
  %vm818 = vcmask 523264
  %v820 = vsel %vm818, %v801, 0
  %822 = vmatprep.subr.mxu0 %v803
  %823 = vmatpush1.msra.mxu0 %v802
  %824 = vmatprep.subr.mxu0 %v805
  %825 = vmatpush1.msra.mxu0 %v804
  %826 = vmatprep.subr.mxu0 %v807
  %827 = vmatpush1.msra.mxu0 %v806
  %828 = vmatprep.subr.mxu0 %v809
  %829 = vmatpush1.msra.mxu0 %v808
  %830 = vmatprep.subr.mxu0 %v811
  %831 = vmatpush1.msra.mxu0 %v810
  %832 = vmatprep.subr.mxu0 %v813
  %833 = vmatpush1.msra.mxu0 %v812
  %834 = vmatprep.subr.mxu0 %v815
  %835 = vmatpush1.msra.mxu0 %v814
  %836 = vmatprep.subr.mxu0 %v817
  %837 = vmatpush1.msra.mxu0 %v816
  %838 = vmatprep.subr.mxu0 0.0
  %839 = vmatpush1.msra.mxu0 0.0
  %840 = vmatprep.subr.mxu0 0.0
  %841 = vmatpush1.msra.mxu0 0.0
  %842 = vmatprep.subr.mxu0 0.0
  %843 = vmatpush1.msra.mxu0 0.0
  %844 = vmatprep.subr.mxu0 0.0
  %845 = vmatpush1.msra.mxu0 0.0
  %846 = vmatprep.subr.mxu0 0.0
  %847 = vmatpush1.msra.mxu0 0.0
  %848 = vmatprep.subr.mxu0 0.0
  %849 = vmatpush1.msra.mxu0 0.0
  %850 = vmatprep.subr.mxu0 0.0
  %851 = vmatpush1.msra.mxu0 0.0
  %852 = vmatprep.subr.mxu0 0.0
  %853 = vmatpush1.msra.mxu0 0.0
  %854 = vmatprep.subr.mxu0 0.0
  %855 = vmatpush1.msra.mxu0 0.0
  %856 = vmatprep.subr.mxu0 0.0
  %857 = vmatpush1.msra.mxu0 0.0
  %858 = vmatprep.subr.mxu0 0.0
  %859 = vmatpush1.msra.mxu0 0.0
  %860 = vmatprep.subr.mxu0 0.0
  %861 = vmatpush1.msra.mxu0 0.0
  %862 = vmatprep.subr.mxu0 0.0
  %863 = vmatpush1.msra.mxu0 0.0
  %864 = vmatprep.subr.mxu0 0.0
  %865 = vmatpush1.msra.mxu0 0.0
  %866 = vmatprep.subr.mxu0 0.0
  %867 = vmatpush1.msra.mxu0 0.0
  %868 = vmatprep.subr.mxu0 0.0
  %869 = vmatpush1.msra.mxu0 0.0
  %870 = vmatprep.subr.mxu0 0.0
  %871 = vmatpush1.msra.mxu0 0.0
  %872 = vmatprep.subr.mxu0 0.0
  %873 = vmatpush1.msra.mxu0 0.0
  %874 = vmatprep.subr.mxu0 0.0
  %875 = vmatpush1.msra.mxu0 0.0
  %876 = vmatprep.subr.mxu0 0.0
  %877 = vmatpush1.msra.mxu0 0.0
  %878 = vmatprep.subr.mxu0 0.0
  %879 = vmatpush1.msra.mxu0 0.0
  %880 = vmatprep.subr.mxu0 0.0
  %881 = vmatpush1.msra.mxu0 0.0
  %882 = vmatprep.subr.mxu0 0.0
  %883 = vmatpush1.msra.mxu0 0.0
  %884 = vmatprep.subr.mxu0 0.0
  %885 = vmatpush1.msra.mxu0 0.0
  %886 = vmatprep.mubr.f32.mxu0 0.0
  %887 = vmatmul.mubr.f32.gmra.mrb[0].mxu0 %v820
  %v888 = vpop.f32.mrb[0].mxu0
  %v889 = vadd.f32 %v686, %v888
  %v890 = vpop.f32.mrb[0].mxu0
  %v891 = vadd.f32 %v687, %v890
  %892 = vdwg.mxu0
  %v893 = vxor.u32 %v889, 2147483648
  %v894 = vxor.u32 %v891, 2147483648
  %v895 = vmul.f32 %v893, 1.442695
  %v896 = vpow.pop %v895
  %v897 = vmul.f32 %v894, 1.442695
  %v898 = vpow.pop %v897
  %v899 = vadd.f32 %v896, 1.0
  %v900 = vadd.f32 %v898, 1.0
  %v901 = vrcp.pop %v899
  %v902 = vmul.f32 1.0, %v901
  %v903 = vrcp.pop %v900
  %v904 = vmul.f32 1.0, %v903
  %v905 = vtanh.pop %v891
  %v906 = vmul.f32 %v902, 0.0
  %908 = vrot.lane.b32.xlu0 %v905, 64
  %v909 = vpop.permute.xlu0 %908
  %v911 = vmul.f32 %v902, %v909
  %913 = vrot.lane.b32.xlu0 %v911, 64
  %v914 = vpop.permute.xlu0 %913
  %v916 = vadd.f32 %v906, %v914
  %v917 = vtanh.pop %v916
  %919 = vrot.lane.b32.xlu0 %v917, 64
  %v920 = vpop.permute.xlu0 %919
  %v922 = vmul.f32 %v904, %v920
  %v925 = vrot.slane %v692, 2
  %v926 = vrot.slane %v693, 2
  %v930 = vsel %vm818, %v922, 0
  %932 = vmatprep.subr.mxu0 %v803
  %933 = vmatpush1.msra.mxu0 %v802
  %934 = vmatprep.subr.mxu0 %v805
  %935 = vmatpush1.msra.mxu0 %v804
  %936 = vmatprep.subr.mxu0 %v807
  %937 = vmatpush1.msra.mxu0 %v806
  %938 = vmatprep.subr.mxu0 %v809
  %939 = vmatpush1.msra.mxu0 %v808
  %940 = vmatprep.subr.mxu0 %v811
  %941 = vmatpush1.msra.mxu0 %v810
  %942 = vmatprep.subr.mxu0 %v813
  %943 = vmatpush1.msra.mxu0 %v812
  %944 = vmatprep.subr.mxu0 %v815
  %945 = vmatpush1.msra.mxu0 %v814
  %946 = vmatprep.subr.mxu0 %v817
  %947 = vmatpush1.msra.mxu0 %v816
  %948 = vmatprep.subr.mxu0 0.0
  %949 = vmatpush1.msra.mxu0 0.0
  %950 = vmatprep.subr.mxu0 0.0
  %951 = vmatpush1.msra.mxu0 0.0
  %952 = vmatprep.subr.mxu0 0.0
  %953 = vmatpush1.msra.mxu0 0.0
  %954 = vmatprep.subr.mxu0 0.0
  %955 = vmatpush1.msra.mxu0 0.0
  %956 = vmatprep.subr.mxu0 0.0
  %957 = vmatpush1.msra.mxu0 0.0
  %958 = vmatprep.subr.mxu0 0.0
  %959 = vmatpush1.msra.mxu0 0.0
  %960 = vmatprep.subr.mxu0 0.0
  %961 = vmatpush1.msra.mxu0 0.0
  %962 = vmatprep.subr.mxu0 0.0
  %963 = vmatpush1.msra.mxu0 0.0
  %964 = vmatprep.subr.mxu0 0.0
  %965 = vmatpush1.msra.mxu0 0.0
  %966 = vmatprep.subr.mxu0 0.0
  %967 = vmatpush1.msra.mxu0 0.0
  %968 = vmatprep.subr.mxu0 0.0
  %969 = vmatpush1.msra.mxu0 0.0
  %970 = vmatprep.subr.mxu0 0.0
  %971 = vmatpush1.msra.mxu0 0.0
  %972 = vmatprep.subr.mxu0 0.0
  %973 = vmatpush1.msra.mxu0 0.0
  %974 = vmatprep.subr.mxu0 0.0
  %975 = vmatpush1.msra.mxu0 0.0
  %976 = vmatprep.subr.mxu0 0.0
  %977 = vmatpush1.msra.mxu0 0.0
  %978 = vmatprep.subr.mxu0 0.0
  %979 = vmatpush1.msra.mxu0 0.0
  %980 = vmatprep.subr.mxu0 0.0
  %981 = vmatpush1.msra.mxu0 0.0
  %982 = vmatprep.subr.mxu0 0.0
  %983 = vmatpush1.msra.mxu0 0.0
  %984 = vmatprep.subr.mxu0 0.0
  %985 = vmatpush1.msra.mxu0 0.0
  %986 = vmatprep.subr.mxu0 0.0
  %987 = vmatpush1.msra.mxu0 0.0
  %988 = vmatprep.subr.mxu0 0.0
  %989 = vmatpush1.msra.mxu0 0.0
  %990 = vmatprep.subr.mxu0 0.0
  %991 = vmatpush1.msra.mxu0 0.0
  %992 = vmatprep.subr.mxu0 0.0
  %993 = vmatpush1.msra.mxu0 0.0
  %994 = vmatprep.subr.mxu0 0.0
  %995 = vmatpush1.msra.mxu0 0.0
  %996 = vmatprep.mubr.f32.mxu0 0.0
  %997 = vmatmul.mubr.f32.gmra.mrb[0].mxu0 %v930
  %v998 = vpop.f32.mrb[0].mxu0
  %v999 = vadd.f32 %v925, %v998
  %v1000 = vpop.f32.mrb[0].mxu0
  %v1001 = vadd.f32 %v926, %v1000
  %1002 = vdwg.mxu0
  %v1003 = vxor.u32 %v999, 2147483648
  %v1004 = vxor.u32 %v1001, 2147483648
  %v1005 = vmul.f32 %v1003, 1.442695
  %v1006 = vpow.pop %v1005
  %v1007 = vmul.f32 %v1004, 1.442695
  %v1008 = vpow.pop %v1007
  %v1009 = vadd.f32 %v1006, 1.0
  %v1010 = vadd.f32 %v1008, 1.0
  %v1011 = vrcp.pop %v1009
  %v1012 = vmul.f32 1.0, %v1011
  %v1013 = vrcp.pop %v1010
  %v1014 = vmul.f32 1.0, %v1013
  %v1015 = vtanh.pop %v1001
  %v1016 = vmul.f32 %v1012, %v916
  %1018 = vrot.lane.b32.xlu0 %v1015, 64
  %v1019 = vpop.permute.xlu0 %1018
  %v1021 = vmul.f32 %v1012, %v1019
  %1023 = vrot.lane.b32.xlu0 %v1021, 64
  %v1024 = vpop.permute.xlu0 %1023
  %v1026 = vadd.f32 %v1016, %v1024
  %v1027 = vtanh.pop %v1026
  %1029 = vrot.lane.b32.xlu0 %v1027, 64
  %v1030 = vpop.permute.xlu0 %1029
  %v1032 = vmul.f32 %v1014, %v1030
  %v1035 = vrot.slane %v686, 4
  %v1036 = vrot.slane %v687, 4
  %v1040 = vsel %vm818, %v1032, 0
  %1042 = vmatprep.subr.mxu0 %v803
  %1043 = vmatpush1.msra.mxu0 %v802
  %1044 = vmatprep.subr.mxu0 %v805
  %1045 = vmatpush1.msra.mxu0 %v804
  %1046 = vmatprep.subr.mxu0 %v807
  %1047 = vmatpush1.msra.mxu0 %v806
  %1048 = vmatprep.subr.mxu0 %v809
  %1049 = vmatpush1.msra.mxu0 %v808
  %1050 = vmatprep.subr.mxu0 %v811
  %1051 = vmatpush1.msra.mxu0 %v810
  %1052 = vmatprep.subr.mxu0 %v813
  %1053 = vmatpush1.msra.mxu0 %v812
  %1054 = vmatprep.subr.mxu0 %v815
  %1055 = vmatpush1.msra.mxu0 %v814
  %1056 = vmatprep.subr.mxu0 %v817
  %1057 = vmatpush1.msra.mxu0 %v816
  %1058 = vmatprep.subr.mxu0 0.0
  %1059 = vmatpush1.msra.mxu0 0.0
  %1060 = vmatprep.subr.mxu0 0.0
  %1061 = vmatpush1.msra.mxu0 0.0
  %1062 = vmatprep.subr.mxu0 0.0
  %1063 = vmatpush1.msra.mxu0 0.0
  %1064 = vmatprep.subr.mxu0 0.0
  %1065 = vmatpush1.msra.mxu0 0.0
  %1066 = vmatprep.subr.mxu0 0.0
  %1067 = vmatpush1.msra.mxu0 0.0
  %1068 = vmatprep.subr.mxu0 0.0
  %1069 = vmatpush1.msra.mxu0 0.0
  %1070 = vmatprep.subr.mxu0 0.0
  %1071 = vmatpush1.msra.mxu0 0.0
  %1072 = vmatprep.subr.mxu0 0.0
  %1073 = vmatpush1.msra.mxu0 0.0
  %1074 = vmatprep.subr.mxu0 0.0
  %1075 = vmatpush1.msra.mxu0 0.0
  %1076 = vmatprep.subr.mxu0 0.0
  %1077 = vmatpush1.msra.mxu0 0.0
  %1078 = vmatprep.subr.mxu0 0.0
  %1079 = vmatpush1.msra.mxu0 0.0
  %1080 = vmatprep.subr.mxu0 0.0
  %1081 = vmatpush1.msra.mxu0 0.0
  %1082 = vmatprep.subr.mxu0 0.0
  %1083 = vmatpush1.msra.mxu0 0.0
  %1084 = vmatprep.subr.mxu0 0.0
  %1085 = vmatpush1.msra.mxu0 0.0
  %1086 = vmatprep.subr.mxu0 0.0
  %1087 = vmatpush1.msra.mxu0 0.0
  %1088 = vmatprep.subr.mxu0 0.0
  %1089 = vmatpush1.msra.mxu0 0.0
  %1090 = vmatprep.subr.mxu0 0.0
  %1091 = vmatpush1.msra.mxu0 0.0
  %1092 = vmatprep.subr.mxu0 0.0
  %1093 = vmatpush1.msra.mxu0 0.0
  %1094 = vmatprep.subr.mxu0 0.0
  %1095 = vmatpush1.msra.mxu0 0.0
  %1096 = vmatprep.subr.mxu0 0.0
  %1097 = vmatpush1.msra.mxu0 0.0
  %1098 = vmatprep.subr.mxu0 0.0
  %1099 = vmatpush1.msra.mxu0 0.0
  %1100 = vmatprep.subr.mxu0 0.0
  %1101 = vmatpush1.msra.mxu0 0.0
  %1102 = vmatprep.subr.mxu0 0.0
  %1103 = vmatpush1.msra.mxu0 0.0
  %1104 = vmatprep.subr.mxu0 0.0
  %1105 = vmatpush1.msra.mxu0 0.0
  %1106 = vmatprep.mubr.f32.mxu0 0.0
  %1107 = vmatmul.mubr.f32.gmra.mrb[0].mxu0 %v1040
  %v1108 = vpop.f32.mrb[0].mxu0
  %v1109 = vadd.f32 %v1035, %v1108
  %v1110 = vpop.f32.mrb[0].mxu0
  %v1111 = vadd.f32 %v1036, %v1110
  %1112 = vdwg.mxu0
  %v1113 = vxor.u32 %v1109, 2147483648
  %v1114 = vxor.u32 %v1111, 2147483648
  %v1115 = vmul.f32 %v1113, 1.442695
  %v1116 = vpow.pop %v1115
  %v1117 = vmul.f32 %v1114, 1.442695
  %v1118 = vpow.pop %v1117
  %v1119 = vadd.f32 %v1116, 1.0
  %v1120 = vadd.f32 %v1118, 1.0
  %v1121 = vrcp.pop %v1119
  %v1122 = vmul.f32 1.0, %v1121
  %v1123 = vrcp.pop %v1120
  %v1124 = vmul.f32 1.0, %v1123
  %v1125 = vtanh.pop %v1111
  %v1126 = vmul.f32 %v1122, %v1026
  %1128 = vrot.lane.b32.xlu0 %v1125, 64
  %v1129 = vpop.permute.xlu0 %1128
  %v1131 = vmul.f32 %v1122, %v1129
  %1133 = vrot.lane.b32.xlu0 %v1131, 64
  %v1134 = vpop.permute.xlu0 %1133
  %v1136 = vadd.f32 %v1126, %v1134
  %v1137 = vtanh.pop %v1136
  %1139 = vrot.lane.b32.xlu0 %v1137, 64
  %v1140 = vpop.permute.xlu0 %1139
  %v1142 = vmul.f32 %v1124, %v1140
  %v1143 = vrot.slane %v692, 6
  %v1144 = vrot.slane %v693, 6
  %v1148 = vsel %vm818, %v1142, 0
  %1150 = vmatprep.subr.mxu0 %v803
  %1151 = vmatpush1.msra.mxu0 %v802
  %1152 = vmatprep.subr.mxu0 %v805
  %1153 = vmatpush1.msra.mxu0 %v804
  %1154 = vmatprep.subr.mxu0 %v807
  %1155 = vmatpush1.msra.mxu0 %v806
  %1156 = vmatprep.subr.mxu0 %v809
  %1157 = vmatpush1.msra.mxu0 %v808
  %1158 = vmatprep.subr.mxu0 %v811
  %1159 = vmatpush1.msra.mxu0 %v810
  %1160 = vmatprep.subr.mxu0 %v813
  %1161 = vmatpush1.msra.mxu0 %v812
  %1162 = vmatprep.subr.mxu0 %v815
  %1163 = vmatpush1.msra.mxu0 %v814
  %1164 = vmatprep.subr.mxu0 %v817
  %1165 = vmatpush1.msra.mxu0 %v816
  %1166 = vmatprep.subr.mxu0 0.0
  %1167 = vmatpush1.msra.mxu0 0.0
  %1168 = vmatprep.subr.mxu0 0.0
  %1169 = vmatpush1.msra.mxu0 0.0
  %1170 = vmatprep.subr.mxu0 0.0
  %1171 = vmatpush1.msra.mxu0 0.0
  %1172 = vmatprep.subr.mxu0 0.0
  %1173 = vmatpush1.msra.mxu0 0.0
  %1174 = vmatprep.subr.mxu0 0.0
  %1175 = vmatpush1.msra.mxu0 0.0
  %1176 = vmatprep.subr.mxu0 0.0
  %1177 = vmatpush1.msra.mxu0 0.0
  %1178 = vmatprep.subr.mxu0 0.0
  %1179 = vmatpush1.msra.mxu0 0.0
  %1180 = vmatprep.subr.mxu0 0.0
  %1181 = vmatpush1.msra.mxu0 0.0
  %1182 = vmatprep.subr.mxu0 0.0
  %1183 = vmatpush1.msra.mxu0 0.0
  %1184 = vmatprep.subr.mxu0 0.0
  %1185 = vmatpush1.msra.mxu0 0.0
  %1186 = vmatprep.subr.mxu0 0.0
  %1187 = vmatpush1.msra.mxu0 0.0
  %1188 = vmatprep.subr.mxu0 0.0
  %1189 = vmatpush1.msra.mxu0 0.0
  %1190 = vmatprep.subr.mxu0 0.0
  %1191 = vmatpush1.msra.mxu0 0.0
  %1192 = vmatprep.subr.mxu0 0.0
  %1193 = vmatpush1.msra.mxu0 0.0
  %1194 = vmatprep.subr.mxu0 0.0
  %1195 = vmatpush1.msra.mxu0 0.0
  %1196 = vmatprep.subr.mxu0 0.0
  %1197 = vmatpush1.msra.mxu0 0.0
  %1198 = vmatprep.subr.mxu0 0.0
  %1199 = vmatpush1.msra.mxu0 0.0
  %1200 = vmatprep.subr.mxu0 0.0
  %1201 = vmatpush1.msra.mxu0 0.0
  %1202 = vmatprep.subr.mxu0 0.0
  %1203 = vmatpush1.msra.mxu0 0.0
  %1204 = vmatprep.subr.mxu0 0.0
  %1205 = vmatpush1.msra.mxu0 0.0
  %1206 = vmatprep.subr.mxu0 0.0
  %1207 = vmatpush1.msra.mxu0 0.0
  %1208 = vmatprep.subr.mxu0 0.0
  %1209 = vmatpush1.msra.mxu0 0.0
  %1210 = vmatprep.subr.mxu0 0.0
  %1211 = vmatpush1.msra.mxu0 0.0
  %1212 = vmatprep.subr.mxu0 0.0
  %1213 = vmatpush1.msra.mxu0 0.0
  %1214 = vmatprep.mubr.f32.mxu0 0.0
  %1215 = vmatmul.mubr.f32.gmra.mrb[0].mxu0 %v1148
  %v1216 = vpop.f32.mrb[0].mxu0
  %v1217 = vadd.f32 %v1143, %v1216
  %v1218 = vpop.f32.mrb[0].mxu0
  %v1219 = vadd.f32 %v1144, %v1218
  %1220 = vdwg.mxu0
  %v1221 = vxor.u32 %v1217, 2147483648
  %v1222 = vxor.u32 %v1219, 2147483648
  %v1223 = vmul.f32 %v1221, 1.442695
  %v1224 = vpow.pop %v1223
  %v1225 = vmul.f32 %v1222, 1.442695
  %v1226 = vpow.pop %v1225
  %v1227 = vadd.f32 %v1224, 1.0
  %v1228 = vadd.f32 %v1226, 1.0
  %v1229 = vrcp.pop %v1227
  %v1230 = vmul.f32 1.0, %v1229
  %v1231 = vrcp.pop %v1228
  %v1232 = vmul.f32 1.0, %v1231
  %v1233 = vtanh.pop %v1219
  %v1234 = vmul.f32 %v1230, %v1136
  %1236 = vrot.lane.b32.xlu0 %v1233, 64
  %v1237 = vpop.permute.xlu0 %1236
  %v1239 = vmul.f32 %v1230, %v1237
  %1241 = vrot.lane.b32.xlu0 %v1239, 64
  %v1242 = vpop.permute.xlu0 %1241
  %v1244 = vadd.f32 %v1234, %v1242
  %v1245 = vtanh.pop %v1244
  %1247 = vrot.lane.b32.xlu0 %v1245, 64
  %v1248 = vpop.permute.xlu0 %1247
  %v1250 = vmul.f32 %v1232, %v1248
  %v1252 = vsel %vm818, %v1250, 0
  %1254 = vmatprep.subr.mxu0 %v803
  %1255 = vmatpush1.msra.mxu0 %v802
  %1256 = vmatprep.subr.mxu0 %v805
  %1257 = vmatpush1.msra.mxu0 %v804
  %1258 = vmatprep.subr.mxu0 %v807
  %1259 = vmatpush1.msra.mxu0 %v806
  %1260 = vmatprep.subr.mxu0 %v809
  %1261 = vmatpush1.msra.mxu0 %v808
  %1262 = vmatprep.subr.mxu0 %v811
  %1263 = vmatpush1.msra.mxu0 %v810
  %1264 = vmatprep.subr.mxu0 %v813
  %1265 = vmatpush1.msra.mxu0 %v812
  %1266 = vmatprep.subr.mxu0 %v815
  %1267 = vmatpush1.msra.mxu0 %v814
  %1268 = vmatprep.subr.mxu0 %v817
  %1269 = vmatpush1.msra.mxu0 %v816
  %1270 = vmatprep.subr.mxu0 0.0
  %1271 = vmatpush1.msra.mxu0 0.0
  %1272 = vmatprep.subr.mxu0 0.0
  %1273 = vmatpush1.msra.mxu0 0.0
  %1274 = vmatprep.subr.mxu0 0.0
  %1275 = vmatpush1.msra.mxu0 0.0
  %1276 = vmatprep.subr.mxu0 0.0
  %1277 = vmatpush1.msra.mxu0 0.0
  %1278 = vmatprep.subr.mxu0 0.0
  %1279 = vmatpush1.msra.mxu0 0.0
  %1280 = vmatprep.subr.mxu0 0.0
  %1281 = vmatpush1.msra.mxu0 0.0
  %1282 = vmatprep.subr.mxu0 0.0
  %1283 = vmatpush1.msra.mxu0 0.0
  %1284 = vmatprep.subr.mxu0 0.0
  %1285 = vmatpush1.msra.mxu0 0.0
  %1286 = vmatprep.subr.mxu0 0.0
  %1287 = vmatpush1.msra.mxu0 0.0
  %1288 = vmatprep.subr.mxu0 0.0
  %1289 = vmatpush1.msra.mxu0 0.0
  %1290 = vmatprep.subr.mxu0 0.0
  %1291 = vmatpush1.msra.mxu0 0.0
  %1292 = vmatprep.subr.mxu0 0.0
  %1293 = vmatpush1.msra.mxu0 0.0
  %1294 = vmatprep.subr.mxu0 0.0
  %1295 = vmatpush1.msra.mxu0 0.0
  %1296 = vmatprep.subr.mxu0 0.0
  %1297 = vmatpush1.msra.mxu0 0.0
  %1298 = vmatprep.subr.mxu0 0.0
  %1299 = vmatpush1.msra.mxu0 0.0
  %1300 = vmatprep.subr.mxu0 0.0
  %1301 = vmatpush1.msra.mxu0 0.0
  %1302 = vmatprep.subr.mxu0 0.0
  %1303 = vmatpush1.msra.mxu0 0.0
  %1304 = vmatprep.subr.mxu0 0.0
  %1305 = vmatpush1.msra.mxu0 0.0
  %1306 = vmatprep.subr.mxu0 0.0
  %1307 = vmatpush1.msra.mxu0 0.0
  %1308 = vmatprep.subr.mxu0 0.0
  %1309 = vmatpush1.msra.mxu0 0.0
  %1310 = vmatprep.subr.mxu0 0.0
  %1311 = vmatpush1.msra.mxu0 0.0
  %1312 = vmatprep.subr.mxu0 0.0
  %1313 = vmatpush1.msra.mxu0 0.0
  %1314 = vmatprep.subr.mxu0 0.0
  %1315 = vmatpush1.msra.mxu0 0.0
  %1316 = vmatprep.subr.mxu0 0.0
  %1317 = vmatpush1.msra.mxu0 0.0
  %1318 = vmatprep.mubr.f32.mxu0 0.0
  %1319 = vmatmul.mubr.f32.gmra.mrb[0].mxu0 %v1252
  %v1320 = vpop.f32.mrb[0].mxu0
  %v1321 = vadd.f32 %v700, %v1320
  %v1322 = vpop.f32.mrb[0].mxu0
  %v1323 = vadd.f32 %v701, %v1322
  %1324 = vdwg.mxu0
  %v1325 = vxor.u32 %v1321, 2147483648
  %v1326 = vxor.u32 %v1323, 2147483648
  %v1327 = vmul.f32 %v1325, 1.442695
  %v1328 = vpow.pop %v1327
  %v1329 = vmul.f32 %v1326, 1.442695
  %v1330 = vpow.pop %v1329
  %v1331 = vadd.f32 %v1328, 1.0
  %v1332 = vadd.f32 %v1330, 1.0
  %v1333 = vrcp.pop %v1331
  %v1334 = vmul.f32 1.0, %v1333
  %v1335 = vrcp.pop %v1332
  %v1336 = vmul.f32 1.0, %v1335
  %v1337 = vtanh.pop %v1323
  %v1338 = vmul.f32 %v1334, %v1244
  %1340 = vrot.lane.b32.xlu0 %v1337, 64
  %v1341 = vpop.permute.xlu0 %1340
  %v1343 = vmul.f32 %v1334, %v1341
  %1345 = vrot.lane.b32.xlu0 %v1343, 64
  %v1346 = vpop.permute.xlu0 %1345
  %v1348 = vadd.f32 %v1338, %v1346
  %v1349 = vtanh.pop %v1348
  %1351 = vrot.lane.b32.xlu0 %v1349, 64
  %v1352 = vpop.permute.xlu0 %1351
  %v1354 = vmul.f32 %v1336, %v1352
  %v1357 = vrot.slane %v706, 2
  %v1358 = vrot.slane %v707, 2
  %v1362 = vsel %vm818, %v1354, 0
  %1364 = vmatprep.subr.mxu0 %v803
  %1365 = vmatpush1.msra.mxu0 %v802
  %1366 = vmatprep.subr.mxu0 %v805
  %1367 = vmatpush1.msra.mxu0 %v804
  %1368 = vmatprep.subr.mxu0 %v807
  %1369 = vmatpush1.msra.mxu0 %v806
  %1370 = vmatprep.subr.mxu0 %v809
  %1371 = vmatpush1.msra.mxu0 %v808
  %1372 = vmatprep.subr.mxu0 %v811
  %1373 = vmatpush1.msra.mxu0 %v810
  %1374 = vmatprep.subr.mxu0 %v813
  %1375 = vmatpush1.msra.mxu0 %v812
  %1376 = vmatprep.subr.mxu0 %v815
  %1377 = vmatpush1.msra.mxu0 %v814
  %1378 = vmatprep.subr.mxu0 %v817
  %1379 = vmatpush1.msra.mxu0 %v816
  %1380 = vmatprep.subr.mxu0 0.0
  %1381 = vmatpush1.msra.mxu0 0.0
  %1382 = vmatprep.subr.mxu0 0.0
  %1383 = vmatpush1.msra.mxu0 0.0
  %1384 = vmatprep.subr.mxu0 0.0
  %1385 = vmatpush1.msra.mxu0 0.0
  %1386 = vmatprep.subr.mxu0 0.0
  %1387 = vmatpush1.msra.mxu0 0.0
  %1388 = vmatprep.subr.mxu0 0.0
  %1389 = vmatpush1.msra.mxu0 0.0
  %1390 = vmatprep.subr.mxu0 0.0
  %1391 = vmatpush1.msra.mxu0 0.0
  %1392 = vmatprep.subr.mxu0 0.0
  %1393 = vmatpush1.msra.mxu0 0.0
  %1394 = vmatprep.subr.mxu0 0.0
  %1395 = vmatpush1.msra.mxu0 0.0
  %1396 = vmatprep.subr.mxu0 0.0
  %1397 = vmatpush1.msra.mxu0 0.0
  %1398 = vmatprep.subr.mxu0 0.0
  %1399 = vmatpush1.msra.mxu0 0.0
  %1400 = vmatprep.subr.mxu0 0.0
  %1401 = vmatpush1.msra.mxu0 0.0
  %1402 = vmatprep.subr.mxu0 0.0
  %1403 = vmatpush1.msra.mxu0 0.0
  %1404 = vmatprep.subr.mxu0 0.0
  %1405 = vmatpush1.msra.mxu0 0.0
  %1406 = vmatprep.subr.mxu0 0.0
  %1407 = vmatpush1.msra.mxu0 0.0
  %1408 = vmatprep.subr.mxu0 0.0
  %1409 = vmatpush1.msra.mxu0 0.0
  %1410 = vmatprep.subr.mxu0 0.0
  %1411 = vmatpush1.msra.mxu0 0.0
  %1412 = vmatprep.subr.mxu0 0.0
  %1413 = vmatpush1.msra.mxu0 0.0
  %1414 = vmatprep.subr.mxu0 0.0
  %1415 = vmatpush1.msra.mxu0 0.0
  %1416 = vmatprep.subr.mxu0 0.0
  %1417 = vmatpush1.msra.mxu0 0.0
  %1418 = vmatprep.subr.mxu0 0.0
  %1419 = vmatpush1.msra.mxu0 0.0
  %1420 = vmatprep.subr.mxu0 0.0
  %1421 = vmatpush1.msra.mxu0 0.0
  %1422 = vmatprep.subr.mxu0 0.0
  %1423 = vmatpush1.msra.mxu0 0.0
  %1424 = vmatprep.subr.mxu0 0.0
  %1425 = vmatpush1.msra.mxu0 0.0
  %1426 = vmatprep.subr.mxu0 0.0
  %1427 = vmatpush1.msra.mxu0 0.0
  %1428 = vmatprep.mubr.f32.mxu0 0.0
  %1429 = vmatmul.mubr.f32.gmra.mrb[0].mxu0 %v1362
  %v1430 = vpop.f32.mrb[0].mxu0
  %v1431 = vadd.f32 %v1357, %v1430
  %v1432 = vpop.f32.mrb[0].mxu0
  %v1433 = vadd.f32 %v1358, %v1432
  %1434 = vdwg.mxu0
  %v1435 = vxor.u32 %v1431, 2147483648
  %v1436 = vxor.u32 %v1433, 2147483648
  %v1437 = vmul.f32 %v1435, 1.442695
  %v1438 = vpow.pop %v1437
  %v1439 = vmul.f32 %v1436, 1.442695
  %v1440 = vpow.pop %v1439
  %v1441 = vadd.f32 %v1438, 1.0
  %v1442 = vadd.f32 %v1440, 1.0
  %v1443 = vrcp.pop %v1441
  %v1444 = vmul.f32 1.0, %v1443
  %v1445 = vrcp.pop %v1442
  %v1446 = vmul.f32 1.0, %v1445
  %v1447 = vtanh.pop %v1433
  %v1448 = vmul.f32 %v1444, %v1348
  %1450 = vrot.lane.b32.xlu0 %v1447, 64
  %v1451 = vpop.permute.xlu0 %1450
  %v1453 = vmul.f32 %v1444, %v1451
  %1455 = vrot.lane.b32.xlu0 %v1453, 64
  %v1456 = vpop.permute.xlu0 %1455
  %v1458 = vadd.f32 %v1448, %v1456
  %v1459 = vtanh.pop %v1458
  %1461 = vrot.lane.b32.xlu0 %v1459, 64
  %v1462 = vpop.permute.xlu0 %1461
  %v1464 = vmul.f32 %v1446, %v1462
  %v1467 = vrot.slane %v700, 4
  %v1468 = vrot.slane %v701, 4
  %v1472 = vsel %vm818, %v1464, 0
  %1474 = vmatprep.subr.mxu0 %v803
  %1475 = vmatpush1.msra.mxu0 %v802
  %1476 = vmatprep.subr.mxu0 %v805
  %1477 = vmatpush1.msra.mxu0 %v804
  %1478 = vmatprep.subr.mxu0 %v807
  %1479 = vmatpush1.msra.mxu0 %v806
  %1480 = vmatprep.subr.mxu0 %v809
  %1481 = vmatpush1.msra.mxu0 %v808
  %1482 = vmatprep.subr.mxu0 %v811
  %1483 = vmatpush1.msra.mxu0 %v810
  %1484 = vmatprep.subr.mxu0 %v813
  %1485 = vmatpush1.msra.mxu0 %v812
  %1486 = vmatprep.subr.mxu0 %v815
  %1487 = vmatpush1.msra.mxu0 %v814
  %1488 = vmatprep.subr.mxu0 %v817
  %1489 = vmatpush1.msra.mxu0 %v816
  %1490 = vmatprep.subr.mxu0 0.0
  %1491 = vmatpush1.msra.mxu0 0.0
  %1492 = vmatprep.subr.mxu0 0.0
  %1493 = vmatpush1.msra.mxu0 0.0
  %1494 = vmatprep.subr.mxu0 0.0
  %1495 = vmatpush1.msra.mxu0 0.0
  %1496 = vmatprep.subr.mxu0 0.0
  %1497 = vmatpush1.msra.mxu0 0.0
  %1498 = vmatprep.subr.mxu0 0.0
  %1499 = vmatpush1.msra.mxu0 0.0
  %1500 = vmatprep.subr.mxu0 0.0
  %1501 = vmatpush1.msra.mxu0 0.0
  %1502 = vmatprep.subr.mxu0 0.0
  %1503 = vmatpush1.msra.mxu0 0.0
  %1504 = vmatprep.subr.mxu0 0.0
  %1505 = vmatpush1.msra.mxu0 0.0
  %1506 = vmatprep.subr.mxu0 0.0
  %1507 = vmatpush1.msra.mxu0 0.0
  %1508 = vmatprep.subr.mxu0 0.0
  %1509 = vmatpush1.msra.mxu0 0.0
  %1510 = vmatprep.subr.mxu0 0.0
  %1511 = vmatpush1.msra.mxu0 0.0
  %1512 = vmatprep.subr.mxu0 0.0
  %1513 = vmatpush1.msra.mxu0 0.0
  %1514 = vmatprep.subr.mxu0 0.0
  %1515 = vmatpush1.msra.mxu0 0.0
  %1516 = vmatprep.subr.mxu0 0.0
  %1517 = vmatpush1.msra.mxu0 0.0
  %1518 = vmatprep.subr.mxu0 0.0
  %1519 = vmatpush1.msra.mxu0 0.0
  %1520 = vmatprep.subr.mxu0 0.0
  %1521 = vmatpush1.msra.mxu0 0.0
  %1522 = vmatprep.subr.mxu0 0.0
  %1523 = vmatpush1.msra.mxu0 0.0
  %1524 = vmatprep.subr.mxu0 0.0
  %1525 = vmatpush1.msra.mxu0 0.0
  %1526 = vmatprep.subr.mxu0 0.0
  %1527 = vmatpush1.msra.mxu0 0.0
  %1528 = vmatprep.subr.mxu0 0.0
  %1529 = vmatpush1.msra.mxu0 0.0
  %1530 = vmatprep.subr.mxu0 0.0
  %1531 = vmatpush1.msra.mxu0 0.0
  %1532 = vmatprep.subr.mxu0 0.0
  %1533 = vmatpush1.msra.mxu0 0.0
  %1534 = vmatprep.subr.mxu0 0.0
  %1535 = vmatpush1.msra.mxu0 0.0
  %1536 = vmatprep.subr.mxu0 0.0
  %1537 = vmatpush1.msra.mxu0 0.0
  %1538 = vmatprep.mubr.f32.mxu0 0.0
  %1539 = vmatmul.mubr.f32.gmra.mrb[0].mxu0 %v1472
  %v1540 = vpop.f32.mrb[0].mxu0
  %v1541 = vadd.f32 %v1467, %v1540
  %v1542 = vpop.f32.mrb[0].mxu0
  %v1543 = vadd.f32 %v1468, %v1542
  %1544 = vdwg.mxu0
  %v1545 = vxor.u32 %v1541, 2147483648
  %v1546 = vxor.u32 %v1543, 2147483648
  %v1547 = vmul.f32 %v1545, 1.442695
  %v1548 = vpow.pop %v1547
  %v1549 = vmul.f32 %v1546, 1.442695
  %v1550 = vpow.pop %v1549
  %v1551 = vadd.f32 %v1548, 1.0
  %v1552 = vadd.f32 %v1550, 1.0
  %v1553 = vrcp.pop %v1551
  %v1554 = vmul.f32 1.0, %v1553
  %v1555 = vrcp.pop %v1552
  %v1556 = vmul.f32 1.0, %v1555
  %v1557 = vtanh.pop %v1543
  %v1558 = vmul.f32 %v1554, %v1458
  %1560 = vrot.lane.b32.xlu0 %v1557, 64
  %v1561 = vpop.permute.xlu0 %1560
  %v1563 = vmul.f32 %v1554, %v1561
  %1565 = vrot.lane.b32.xlu0 %v1563, 64
  %v1566 = vpop.permute.xlu0 %1565
  %v1568 = vadd.f32 %v1558, %v1566
  %v1569 = vtanh.pop %v1568
  %1571 = vrot.lane.b32.xlu0 %v1569, 64
  %v1572 = vpop.permute.xlu0 %1571
  %v1574 = vmul.f32 %v1556, %v1572
  %v1575 = vrot.slane %v706, 6
  %v1576 = vrot.slane %v707, 6
  %v1580 = vsel %vm818, %v1574, 0
  %1582 = vmatprep.subr.mxu0 %v803
  %1583 = vmatpush1.msra.mxu0 %v802
  %1584 = vmatprep.subr.mxu0 %v805
  %1585 = vmatpush1.msra.mxu0 %v804
  %1586 = vmatprep.subr.mxu0 %v807
  %1587 = vmatpush1.msra.mxu0 %v806
  %1588 = vmatprep.subr.mxu0 %v809
  %1589 = vmatpush1.msra.mxu0 %v808
  %1590 = vmatprep.subr.mxu0 %v811
  %1591 = vmatpush1.msra.mxu0 %v810
  %1592 = vmatprep.subr.mxu0 %v813
  %1593 = vmatpush1.msra.mxu0 %v812
  %1594 = vmatprep.subr.mxu0 %v815
  %1595 = vmatpush1.msra.mxu0 %v814
  %1596 = vmatprep.subr.mxu0 %v817
  %1597 = vmatpush1.msra.mxu0 %v816
  %1598 = vmatprep.subr.mxu0 0.0
  %1599 = vmatpush1.msra.mxu0 0.0
  %1600 = vmatprep.subr.mxu0 0.0
  %1601 = vmatpush1.msra.mxu0 0.0
  %1602 = vmatprep.subr.mxu0 0.0
  %1603 = vmatpush1.msra.mxu0 0.0
  %1604 = vmatprep.subr.mxu0 0.0
  %1605 = vmatpush1.msra.mxu0 0.0
  %1606 = vmatprep.subr.mxu0 0.0
  %1607 = vmatpush1.msra.mxu0 0.0
  %1608 = vmatprep.subr.mxu0 0.0
  %1609 = vmatpush1.msra.mxu0 0.0
  %1610 = vmatprep.subr.mxu0 0.0
  %1611 = vmatpush1.msra.mxu0 0.0
  %1612 = vmatprep.subr.mxu0 0.0
  %1613 = vmatpush1.msra.mxu0 0.0
  %1614 = vmatprep.subr.mxu0 0.0
  %1615 = vmatpush1.msra.mxu0 0.0
  %1616 = vmatprep.subr.mxu0 0.0
  %1617 = vmatpush1.msra.mxu0 0.0
  %1618 = vmatprep.subr.mxu0 0.0
  %1619 = vmatpush1.msra.mxu0 0.0
  %1620 = vmatprep.subr.mxu0 0.0
  %1621 = vmatpush1.msra.mxu0 0.0
  %1622 = vmatprep.subr.mxu0 0.0
  %1623 = vmatpush1.msra.mxu0 0.0
  %1624 = vmatprep.subr.mxu0 0.0
  %1625 = vmatpush1.msra.mxu0 0.0
  %1626 = vmatprep.subr.mxu0 0.0
  %1627 = vmatpush1.msra.mxu0 0.0
  %1628 = vmatprep.subr.mxu0 0.0
  %1629 = vmatpush1.msra.mxu0 0.0
  %1630 = vmatprep.subr.mxu0 0.0
  %1631 = vmatpush1.msra.mxu0 0.0
  %1632 = vmatprep.subr.mxu0 0.0
  %1633 = vmatpush1.msra.mxu0 0.0
  %1634 = vmatprep.subr.mxu0 0.0
  %1635 = vmatpush1.msra.mxu0 0.0
  %1636 = vmatprep.subr.mxu0 0.0
  %1637 = vmatpush1.msra.mxu0 0.0
  %1638 = vmatprep.subr.mxu0 0.0
  %1639 = vmatpush1.msra.mxu0 0.0
  %1640 = vmatprep.subr.mxu0 0.0
  %1641 = vmatpush1.msra.mxu0 0.0
  %1642 = vmatprep.subr.mxu0 0.0
  %1643 = vmatpush1.msra.mxu0 0.0
  %1644 = vmatprep.subr.mxu0 0.0
  %1645 = vmatpush1.msra.mxu0 0.0
  %1646 = vmatprep.mubr.f32.mxu0 0.0
  %1647 = vmatmul.mubr.f32.gmra.mrb[0].mxu0 %v1580
  %v1648 = vpop.f32.mrb[0].mxu0
  %v1649 = vadd.f32 %v1575, %v1648
  %v1650 = vpop.f32.mrb[0].mxu0
  %v1651 = vadd.f32 %v1576, %v1650
  %1652 = vdwg.mxu0
  %v1653 = vxor.u32 %v1649, 2147483648
  %v1654 = vxor.u32 %v1651, 2147483648
  %v1655 = vmul.f32 %v1653, 1.442695
  %v1656 = vpow.pop %v1655
  %v1657 = vmul.f32 %v1654, 1.442695
  %v1658 = vpow.pop %v1657
  %v1659 = vadd.f32 %v1656, 1.0
  %v1660 = vadd.f32 %v1658, 1.0
  %v1661 = vrcp.pop %v1659
  %v1662 = vmul.f32 1.0, %v1661
  %v1663 = vrcp.pop %v1660
  %v1664 = vmul.f32 1.0, %v1663
  %v1665 = vtanh.pop %v1651
  %v1666 = vmul.f32 %v1662, %v1568
  %1668 = vrot.lane.b32.xlu0 %v1665, 64
  %v1669 = vpop.permute.xlu0 %1668
  %v1671 = vmul.f32 %v1662, %v1669
  %1673 = vrot.lane.b32.xlu0 %v1671, 64
  %v1674 = vpop.permute.xlu0 %1673
  %v1676 = vadd.f32 %v1666, %v1674
  %v1677 = vtanh.pop %v1676
  %1679 = vrot.lane.b32.xlu0 %v1677, 64
  %v1680 = vpop.permute.xlu0 %1679
  %v1682 = vmul.f32 %v1664, %v1680
  %v1683 = vrot.slane %v1032, 6
  %v1685 = vrot.slane %v1142, 4
  %v1687 = vrot.slane %v1250, 2
  %v1689 = vrot.slane %v1464, 6
  %v1691 = vrot.slane %v1574, 4
  %v1694 = vrot.slane %v1682, 2
  %v1696 = vsel %vm716, %v922, %v1683
  %v1697 = vsel %vm434, %v1696, %v1685
  %vm1698 = vcmask 1045504
  %v1699 = vsel %vm1698, %v1697, %v1687
  %v1700 = vsel %vm716, %v1354, %v1689
  %v1701 = vsel %vm434, %v1700, %v1691
  %v1702 = vsel %vm1698, %v1701, %v1694
  %v1703 = vrot.slane %v1574, 6
  %v1705 = vrot.slane %v1464, 4
  %v1707 = vrot.slane %v1354, 2
  %v1709 = vrot.slane %v1142, 6
  %v1711 = vrot.slane %v1032, 4
  %v1713 = vrot.slane %v922, 2
  %v1715 = vsel %vm716, %v1682, %v1703
  %v1716 = vsel %vm434, %v1715, %v1705
  %v1717 = vsel %vm1698, %v1716, %v1707
  %v1718 = vsel %vm716, %v1250, %v1709
  %v1719 = vsel %vm434, %v1718, %v1711
  %v1720 = vsel %vm1698, %v1719, %v1713
  %v1721 = vld [vmem:[%s6] sm:$0xf]
  %v1722 = vld [vmem:[%s6 + $0x4] sm:$0xf]
  %v1723 = vld [vmem:[%s6 + $0x8] sm:$0xf]
  %v1724 = vld [vmem:[%s6 + $0xc] sm:$0xf]
  %v1725 = vld [vmem:[%s6 + $0x10] sm:$0xf]
  %v1726 = vld [vmem:[%s6 + $0x14] sm:$0xf]
  %v1727 = vld [vmem:[%s6 + $0x18] sm:$0xf]
  %v1728 = vld [vmem:[%s6 + $0x1c] sm:$0xf]
  %v1729 = vpack.c.bf16 %v1702, %v1699
  %v1730 = vpack.c.bf16 %v1720, %v1717
  %1732 = vrot.lane.b32.xlu0 %v1730, 96
  %v1733 = vpop.permute.xlu0 %1732
  %v1738 = vunpack.c.l.b16 %v1725
  %v1739 = vunpack.c.l.b16 %v1726
  %v1740 = vunpack.c.l.b16 %v1727
  %v1741 = vunpack.c.l.b16 %v1728
  %v1742 = vpack.c.b16 %v1739, %v1738
  %v1743 = vpack.c.b16 %v1741, %v1740
  %v1747 = vsel %vm578, %v1733, 0
  %1749 = vmatprep.subr.bf16.mxu0 0
  %1750 = vmatpush1.bf16.msra.mxu0 %v1742
  %1751 = vmatprep.subr.bf16.mxu0 0
  %1752 = vmatpush1.bf16.msra.mxu0 %v1743
  %1753 = vmatprep.subr.bf16.mxu0 0
  %1754 = vmatpush1.bf16.msra.mxu0 0
  %1755 = vmatprep.subr.bf16.mxu0 0
  %1756 = vmatpush1.bf16.msra.mxu0 0
  %1757 = vmatprep.subr.bf16.mxu0 0
  %1758 = vmatpush1.bf16.msra.mxu0 0
  %1759 = vmatprep.subr.bf16.mxu0 0
  %1760 = vmatpush1.bf16.msra.mxu0 0
  %1761 = vmatprep.subr.bf16.mxu0 0
  %1762 = vmatpush1.bf16.msra.mxu0 0
  %1763 = vmatprep.subr.bf16.mxu0 0
  %1764 = vmatpush1.bf16.msra.mxu0 0
  %1765 = vmatprep.subr.bf16.mxu0 0
  %1766 = vmatpush1.bf16.msra.mxu0 0
  %1767 = vmatprep.subr.bf16.mxu0 0
  %1768 = vmatpush1.bf16.msra.mxu0 0
  %1769 = vmatprep.subr.bf16.mxu0 0
  %1770 = vmatpush1.bf16.msra.mxu0 0
  %1771 = vmatprep.subr.bf16.mxu0 0
  %1772 = vmatpush1.bf16.msra.mxu0 0
  %1773 = vmatprep.subr.bf16.mxu0 0
  %1774 = vmatpush1.bf16.msra.mxu0 0
  %1775 = vmatprep.subr.bf16.mxu0 0
  %1776 = vmatpush1.bf16.msra.mxu0 0
  %1777 = vmatprep.subr.bf16.mxu0 0
  %1778 = vmatpush1.bf16.msra.mxu0 0
  %1779 = vmatprep.subr.bf16.mxu0 0
  %1780 = vmatpush1.bf16.msra.mxu0 0
  %1781 = vmatprep.mubr.bf16.mxu0 0
  %1782 = vmatmul.mubr.bf16.gmra.mrb[0].mxu0 %v1747
  %v1783 = vpop.f32.mrb[0].mxu0
  %v1784 = vadd.f32 0.0, %v1783
  %v1785 = vpop.f32.mrb[0].mxu0
  %v1786 = vpop.f32.mrb[0].mxu0
  %v1787 = vadd.f32 0.0, %v1786
  %v1788 = vpop.f32.mrb[0].mxu0
  %1789 = vdwg.mxu0
  %v1794 = vunpack.c.l.b16 %v1721
  %v1795 = vunpack.c.l.b16 %v1722
  %v1796 = vunpack.c.l.b16 %v1723
  %v1797 = vunpack.c.l.b16 %v1724
  %v1798 = vpack.c.b16 %v1795, %v1794
  %v1799 = vpack.c.b16 %v1797, %v1796
  %v1803 = vsel %vm578, %v1729, 0
  %1805 = vmatprep.subr.bf16.mxu0 0
  %1806 = vmatpush1.bf16.msra.mxu0 %v1798
  %1807 = vmatprep.subr.bf16.mxu0 0
  %1808 = vmatpush1.bf16.msra.mxu0 %v1799
  %1809 = vmatprep.subr.bf16.mxu0 0
  %1810 = vmatpush1.bf16.msra.mxu0 0
  %1811 = vmatprep.subr.bf16.mxu0 0
  %1812 = vmatpush1.bf16.msra.mxu0 0
  %1813 = vmatprep.subr.bf16.mxu0 0
  %1814 = vmatpush1.bf16.msra.mxu0 0
  %1815 = vmatprep.subr.bf16.mxu0 0
  %1816 = vmatpush1.bf16.msra.mxu0 0
  %1817 = vmatprep.subr.bf16.mxu0 0
  %1818 = vmatpush1.bf16.msra.mxu0 0
  %1819 = vmatprep.subr.bf16.mxu0 0
  %1820 = vmatpush1.bf16.msra.mxu0 0
  %1821 = vmatprep.subr.bf16.mxu0 0
  %1822 = vmatpush1.bf16.msra.mxu0 0
  %1823 = vmatprep.subr.bf16.mxu0 0
  %1824 = vmatpush1.bf16.msra.mxu0 0
  %1825 = vmatprep.subr.bf16.mxu0 0
  %1826 = vmatpush1.bf16.msra.mxu0 0
  %1827 = vmatprep.subr.bf16.mxu0 0
  %1828 = vmatpush1.bf16.msra.mxu0 0
  %1829 = vmatprep.subr.bf16.mxu0 0
  %1830 = vmatpush1.bf16.msra.mxu0 0
  %1831 = vmatprep.subr.bf16.mxu0 0
  %1832 = vmatpush1.bf16.msra.mxu0 0
  %1833 = vmatprep.subr.bf16.mxu0 0
  %1834 = vmatpush1.bf16.msra.mxu0 0
  %1835 = vmatprep.subr.bf16.mxu0 0
  %1836 = vmatpush1.bf16.msra.mxu0 0
  %1837 = vmatprep.mubr.bf16.mxu0 0
  %1838 = vmatmul.mubr.bf16.gmra.mrb[0].mxu0 %v1803
  %v1839 = vpop.f32.mrb[0].mxu0
  %v1840 = vadd.f32 %v1784, %v1839
  %v1841 = vpop.f32.mrb[0].mxu0
  %v1842 = vpop.f32.mrb[0].mxu0
  %v1843 = vadd.f32 %v1787, %v1842
  %v1844 = vpop.f32.mrb[0].mxu0
  %1845 = vdwg.mxu0
  %v1846 = vlaneseq
  %v1847 = vshrl.u32 %v1846, 7
  %v1848 = vsub.s32 2, %v1847
  %v1849 = vrot.slane %v32, %v1848
  %v1850 = vadd.f32 %v1840, %v1849
  %v1851 = vadd.f32 %v1843, %v1849
  %vm1852 = vcmask 72704
  %1853 = vst.msk [vmem:[%s8] sm:$0xff] %vm1852, %v1850
  %1854 = vst.msk [vmem:[%s8 + $0x8] sm:$0xff] %vm1852, %v1851
  %1855 = vmax.xlane.f32.xlu0 %v1850
  %v1856 = vpop.xlane.xlu0 %1855
  %1857 = vmax.xlane.f32.xlu0 %v1851
  %v1858 = vpop.xlane.xlu0 %1857
  %v1859 = vlaneseq
  %v1860 = vand.u32 %v1859, 127
  %vm1861 = vcmp.eq.f32.partialorder %v1850, %v1856
  %vm1862 = vcmp.eq.f32.partialorder %v1851, %v1858
  %v1863 = vsel %vm1861, %v1860, 128
  %v1864 = vsel %vm1862, %v1860, 128
  %v1865 = vand.u32 %v1863, 65535
  %v1866 = vshra.s32 %v1863, 16
  %v1867 = vcvt.s32.f32 %v1865
  %v1868 = vcvt.s32.f32 %v1866
  %1869 = vmin.xlane.f32.xlu0 %v1868
  %v1870 = vpop.xlane.xlu0 %1869
  %vm1871 = vcmp.eq.f32.partialorder %v1868, %v1870
  %v1872 = vsel %vm1871, %v1867, inf
  %1873 = vmin.xlane.f32.xlu0 %v1872
  %v1874 = vpop.xlane.xlu0 %1873
  %v1875 = vcvt.f32.s32 %v1874
  %v1876 = vcvt.f32.s32 %v1870
  %v1877 = vshll.u32 %v1876, 16
  %v1878 = vadd.s32 %v1877, %v1875
  %v1879 = vand.u32 %v1864, 65535
  %v1880 = vshra.s32 %v1864, 16
  %v1881 = vcvt.s32.f32 %v1879
  %v1882 = vcvt.s32.f32 %v1880
  %1883 = vmin.xlane.f32.xlu0 %v1882
  %v1884 = vpop.xlane.xlu0 %1883
  %vm1885 = vcmp.eq.f32.partialorder %v1882, %v1884
  %v1886 = vsel %vm1885, %v1881, inf
  %1887 = vmin.xlane.f32.xlu0 %v1886
  %v1888 = vpop.xlane.xlu0 %1887
  %v1889 = vcvt.f32.s32 %v1888
  %v1890 = vcvt.f32.s32 %v1884
  %v1891 = vshll.u32 %v1890, 16
  %v1892 = vadd.s32 %v1891, %v1889
  %vm1893 = vcmask 7168
  %1894 = vst.msk [vmem:[%s9] sm:$0xff] %vm1893, %v1878
  %1895 = vst.msk [vmem:[%s9 + $0x8] sm:$0xff] %vm1893, %v1892
  // Predicated region
  $region34: #{cross_ner_forward.1} parent=0 // pred_check
    _
  $region35: #{cross_ner_forward.1} parent=0 // pred_check_branch
    %1897 = sbr.rel (0) target = $region37
  $region36: #{cross_ner_forward.1} parent=0 // pred_region
    _
  $region37: #{cross_ner_forward.1} parent=0 // pred_fallthru
    _
  // Predicated region
  $region38: #{cross_ner_forward.1} parent=0 // pred_check
    _
  $region39: #{cross_ner_forward.1} parent=0 // pred_check_branch
    %1899 = sbr.rel (0) target = $region41
  $region40: #{cross_ner_forward.1} parent=0 // pred_region
    _
  $region41: #{cross_ner_forward.1} parent=0 // pred_fallthru
    _
  // Predicated region
  $region42: #{cross_ner_forward.1} parent=0 // pred_check
    _
  $region43: #{cross_ner_forward.1} parent=0 // pred_check_branch
    %1901 = sbr.rel (0) target = $region45
  $region44: #{cross_ner_forward.1} parent=0 // pred_region
    _
  $region45: #{cross_ner_forward.1} parent=0 // pred_fallthru
    _
  // Predicated region
  $region46: #{cross_ner_forward.1} parent=0 // pred_check
    _
  $region47: #{cross_ner_forward.1} parent=0 // pred_check_branch
    %1903 = sbr.rel (0) target = $region49
  $region48: #{cross_ner_forward.1} parent=0 // pred_region
    _
  $region49: #{cross_ner_forward.1} parent=0 // pred_fallthru
    _

</llo_original>
